<compile_context>
chip_gen: v6e
topology: v6e:2x2x1
jax: 0.10.0
libtpu: 0.0.40
codegen_flags: <defaults>
</compile_context>

<pallas_src>
import functools
import math

import jax
import jax.numpy as jnp
from jax import lax
from jax.experimental import pallas as pl
from jax.experimental.pallas import tpu as pltpu


def _round_up(x, m):
    return (x + m - 1) // m * m


def _vmem_need_bytes(bn, d_pad, in_itemsize):
    # 4 double-buffered (bn, d) input streams + tiny offset streams + output
    # block + live (bn, bn) f32 temporaries + scaled (bn, d) copies.
    streams = 4 * 2 * bn * d_pad * in_itemsize
    offsets = 2 * 2 * bn * 128 * 4 + 2 * 2 * 8 * bn * 4
    out = 2 * 8 * bn * 4
    temps = 6 * bn * bn * 4 + 4 * bn * d_pad * 4
    return streams + offsets + out + temps


def _pick_bn(n, d_pad, in_itemsize, vmem_cap, block_n=None):
    n128 = _round_up(n, 128)
    if block_n is not None:
        bn = max(128, (int(block_n) // 128) * 128)
    else:
        bn = 128
        for cand in (512, 384, 256):  # largest tile that fits ~60% of VMEM
            if _vmem_need_bytes(cand, d_pad, in_itemsize) <= int(vmem_cap * 0.6):
                bn = cand
                break
    return max(128, min(bn, n128))


def _mmd_tile_kernel(i_tbl, j_tbl, v_tbl,            # SMEM prefetch tables
                     xi_ref, xj_ref, yi_ref, yj_ref,  # (bn, d) row blocks
                     cxi_ref, cyi_ref,                # (bn, 1) col offsets @ i
                     cxj_ref, cyj_ref,                # (1, bn) row offsets @ j
                     out_ref,                         # (8, bn) resident acc
                     *, bn, steps_per_core, scale, exp_dtype):
    c = pl.program_id(0)
    t = pl.program_id(1)
    idx = c * steps_per_core + t
    i_blk = i_tbl[idx]
    j_blk = j_tbl[idx]
    valid = v_tbl[idx] == 1

    @pl.when(t == 0)
    def _init():
        out_ref[...] = jnp.zeros_like(out_ref)

    def gram(a, b):
        # (bn, d) x (bn, d) -> (bn, bn), contracting the feature (lane) dim of
        # both operands directly on the MXU (no transposes through the XLU).
        return lax.dot_general(
            a, b, dimension_numbers=(((1,), (1,)), ((), ())),
            preferred_element_type=jnp.float32)

    def expk(g, col, row):
        # exp(g - c_i - c_j); optional bf16 exp on the v6e/v7x EUP.
        a = g - col - row
        if exp_dtype != jnp.dtype(jnp.float32):
            return jnp.exp(a.astype(exp_dtype)).astype(jnp.float32)
        return jnp.exp(a)

    def fold(tile, w):
        # (bn, bn) -> (8, bn) with pure VPU adds (the reshape only splits the
        # sublane dim by 8), accumulated into the resident output block.
        p = tile.reshape(bn // 8, 8, bn).sum(axis=0)
        if w == 1.0:
            out_ref[...] += p
        else:
            out_ref[...] += jnp.float32(w) * p

    @pl.when(valid)
    def _work():
        # sqrt(1/(2*sig2)) applied once per (bn, d) block -> Gram is already
        # pre-multiplied by inv2s (no (bn, bn) scaling pass).
        xi = xi_ref[...] * scale
        yj = yj_ref[...] * scale
        cxi = cxi_ref[...]       # (bn, 1)
        cyi = cyi_ref[...]       # (bn, 1)
        cxj = cxj_ref[...]       # (1, bn)
        cyj = cyj_ref[...]       # (1, bn)

        exy = expk(gram(xi, yj), cxi, cyj)       # K(X,Y)[block i, block j]

        @pl.when(i_blk != j_blk)
        def _off_diag():
            # i < j tile: symmetric XX/YY halves (doubled) + both XY blocks.
            xj = xj_ref[...] * scale
            yi = yi_ref[...] * scale
            exx = expk(gram(xi, xj), cxi, cxj)   # K(X,X)[i, j]
            eyy = expk(gram(yi, yj), cyi, cyj)   # K(Y,Y)[i, j]
            eyx = expk(gram(yi, xj), cyi, cxj)   # K(X,Y)[j, i] (transposed)
            fold(exx + eyy - exy - eyx, 2.0)

        @pl.when(i_blk == j_blk)
        def _diag():
            exx = expk(gram(xi, xi), cxi, cxj)
            eyy = expk(gram(yj, yj), cyi, cyj)
            kd = exx + eyy - 2.0 * exy
            r = lax.broadcasted_iota(jnp.int32, (bn, bn), 0)
            q = lax.broadcasted_iota(jnp.int32, (bn, bn), 1)
            fold(jnp.where(r == q, 0.0, kd), 1.0)


def debiased_mmd_loss(X, Y, sig2=1.0, *, block_n=None,
                      gram_dtype=jnp.float32, exp_dtype=jnp.float32):
    """Debiased MMD loss with the squared-exponential kernel (cov=None path).

    gram_dtype=jnp.bfloat16 casts X/Y once at the pallas_call boundary and runs
    the Gram matmuls on the bf16-native MXU (f32 accumulation).
    exp_dtype=jnp.bfloat16 (opt-in) runs exp() on the bf16 EUP of v6e/v7x.
    """
    X = jnp.asarray(X, jnp.float32)
    Y = jnp.asarray(Y, jnp.float32)
    n, d = X.shape
    assert Y.shape == (n, d), "X and Y must have the same (N, D) shape"

    inv2s = 1.0 / (2.0 * float(sig2))
    scale = math.sqrt(inv2s)

    in_dtype = jnp.dtype(gram_dtype)
    in_itemsize = in_dtype.itemsize
    d_pad = _round_up(d, 128)   # VMEM lane padding (data itself is not padded)

    try:
        vmem_cap = int(pltpu.get_tpu_info().vmem_capacity_bytes)
    except Exception:
        vmem_cap = 64 << 20     # conservative fallback (v7x-sized VMEM)

    bn = _pick_bn(n, d_pad, in_itemsize, vmem_cap, block_n)
    n_pad = _round_up(n, bn)
    ni = n_pad // bn
    pad_rows = n_pad - n

    Xg = X if in_dtype == jnp.dtype(jnp.float32) else X.astype(in_dtype)
    Yg = Y if in_dtype == jnp.dtype(jnp.float32) else Y.astype(in_dtype)
    if pad_rows:
        Xg = jnp.pad(Xg, ((0, pad_rows), (0, 0)))
        Yg = jnp.pad(Yg, ((0, pad_rows), (0, 0)))

    # Row offsets c = mean(row**2)/(2*sig2), computed once in f32 from the
    # unpadded data (true-D divisor).  Padded rows get 1e9 so every exp()
    # touching them underflows to exactly 0.  Fed in both column (indexed by
    # block i) and row (indexed by block j) layouts -> no in-kernel transposes.
    def offsets(A):
        cvec = jnp.mean(A * A, axis=1) * jnp.float32(inv2s)
        cvec = jnp.pad(cvec, (0, pad_rows), constant_values=1e9)
        cvec = cvec.astype(jnp.float32)
        return cvec.reshape(ni, bn, 1), cvec.reshape(ni, 1, bn)

    cx_col, cx_row = offsets(X)
    cy_col, cy_row = offsets(Y)

    # Upper-triangle (i <= j) tile pairs, round-robined onto a leading size-C
    # core axis so v7x's two TensorCores get balanced work.
    pairs = [(i, j) for i in range(ni) for j in range(i, ni)]
    T = len(pairs)
    C = 2 if T >= 2 else 1
    S = -(-T // C)                      # steps per core row
    i_list = [0] * (C * S)
    j_list = [0] * (C * S)
    v_list = [0] * (C * S)
    for p, (pi, pj) in enumerate(pairs):
        t, cc = divmod(p, C)            # round-robin: core cc gets pairs cc, cc+C, ...
        idx = cc * S + t
        i_list[idx], j_list[idx], v_list[idx] = pi, pj, 1
    i_tbl = jnp.asarray(i_list, jnp.int32)
    j_tbl = jnp.asarray(j_list, jnp.int32)
    v_tbl = jnp.asarray(v_list, jnp.int32)

    def by_i(c, t, it, jt, vt):
        return (it[c * S + t], 0)

    def by_j(c, t, it, jt, vt):
        return (jt[c * S + t], 0)

    def col_by_i(c, t, it, jt, vt):
        return (it[c * S + t], 0, 0)

    def row_by_j(c, t, it, jt, vt):
        return (jt[c * S + t], 0, 0)

    def out_map(c, t, it, jt, vt):
        return (c, 0, 0)

    kernel = functools.partial(
        _mmd_tile_kernel, bn=bn, steps_per_core=S, scale=scale,
        exp_dtype=jnp.dtype(exp_dtype))

    need = _vmem_need_bytes(bn, d_pad, in_itemsize)
    vmem_limit = int(min(max(need + (8 << 20), 32 << 20), int(vmem_cap * 0.9)))

    grams = 4 * (ni * (ni - 1) // 2) + 3 * ni
    partials = pl.pallas_call(
        kernel,
        out_shape=jax.ShapeDtypeStruct((C, 8, bn), jnp.float32),
        grid_spec=pltpu.PrefetchScalarGridSpec(
            num_scalar_prefetch=3,
            grid=(C, S),
            in_specs=[
                pl.BlockSpec((bn, d), by_i),            # X rows, block i
                pl.BlockSpec((bn, d), by_j),            # X rows, block j
                pl.BlockSpec((bn, d), by_i),            # Y rows, block i
                pl.BlockSpec((bn, d), by_j),            # Y rows, block j
                pl.BlockSpec((None, bn, 1), col_by_i),  # cX column offsets @ i
                pl.BlockSpec((None, bn, 1), col_by_i),  # cY column offsets @ i
                pl.BlockSpec((None, 1, bn), row_by_j),  # cX row offsets @ j
                pl.BlockSpec((None, 1, bn), row_by_j),  # cY row offsets @ j
            ],
            out_specs=pl.BlockSpec((None, 8, bn), out_map),
        ),
        compiler_params=pltpu.CompilerParams(
            dimension_semantics=("parallel", "arbitrary"),
            vmem_limit_bytes=vmem_limit),
        cost_estimate=pl.CostEstimate(
            flops=int(2 * grams * bn * bn * d),
            transcendentals=int(grams * bn * bn),
            bytes_accessed=int(C * S * 4 * bn * d * in_itemsize
                               + 2 * n_pad * d * in_itemsize
                               + C * 8 * bn * 4)),
    )(i_tbl, j_tbl, v_tbl, Xg, Xg, Yg, Yg, cx_col, cy_col, cx_row, cy_row)

    # Deferred normalization: one *sig2 and one /n^2 on the final scalar.
    return jnp.sum(partials) * jnp.float32(float(sig2) / float(n * n))


def _reference_loss(X, Y, sig2=1.0):
    """Plain-JAX reference mirroring the PyTorch forward."""
    def se(A, B):
        an = jnp.mean(A * A, axis=1)
        bn_ = jnp.mean(B * B, axis=1)
        num = jnp.exp(A @ B.T / (2.0 * sig2))
        den = jnp.exp(an / (2.0 * sig2))[:, None] * jnp.exp(bn_ / (2.0 * sig2))[None, :]
        return num / den * sig2

    kd = se(X, X) + se(Y, Y) - 2.0 * se(X, Y)
    kd = kd * (1.0 - jnp.eye(kd.shape[0], dtype=kd.dtype))
    return jnp.mean(kd)


if __name__ == "__main__":
    key = jax.random.PRNGKey(0)
    kx, ky = jax.random.split(key)
    N, D = 320, 96
    # Integer-eighths data is exactly representable in bf16, so the bf16 Gram
    # path agrees with the f32 reference to f32 rounding (sig2=0.5 below makes
    # the in-kernel sqrt(1/(2*sig2)) scale exactly 1).
    X = jax.random.randint(kx, (N, D), -4, 5).astype(jnp.float32) / 8.0
    Y = jax.random.randint(ky, (N, D), -4, 5).astype(jnp.float32) / 8.0 + 0.125

    ref1 = _reference_loss(X, Y, sig2=1.0)

    # Multi-tile triangular grid: bn=128 -> ni=3, 6 tile pairs over 2 core rows
    # (exercises diag tiles, off-diag symmetric path, padded-row masking).
    loss1 = debiased_mmd_loss(X, Y, sig2=1.0, block_n=128)
    jax.block_until_ready(loss1)
    assert jnp.allclose(loss1, ref1, rtol=1e-3, atol=1e-5), (loss1, ref1)

    # bn=256 -> ni=2, 3 tile pairs + one padded/invalid grid step; sig2 plumbing.
    loss2 = debiased_mmd_loss(X, Y, sig2=2.0, block_n=256)
    ref2 = _reference_loss(X, Y, sig2=2.0)
    assert jnp.allclose(loss2, ref2, rtol=1e-3, atol=1e-5), (loss2, ref2)

    # Auto (generation-aware) block size -> single heavily padded diagonal tile.
    loss3 = debiased_mmd_loss(X, Y, sig2=1.0)
    assert jnp.allclose(loss3, ref1, rtol=1e-3, atol=1e-5), (loss3, ref1)

    # Tiny shape -> single 128-row tile.
    Xs, Ys = X[:16, :32], Y[:16, :32]
    loss4 = debiased_mmd_loss(Xs, Ys)
    ref4 = _reference_loss(Xs, Ys)
    assert jnp.allclose(loss4, ref4, rtol=1e-3, atol=1e-5), (loss4, ref4)

    # bf16 Gram path (boundary cast halves HBM traffic / input VMEM).
    loss5 = debiased_mmd_loss(X, Y, sig2=0.5, block_n=128, gram_dtype=jnp.bfloat16)
    ref5 = _reference_loss(X, Y, sig2=0.5)
    assert jnp.allclose(loss5, ref5, rtol=5e-3, atol=1e-4), (loss5, ref5)

    # Opt-in bf16 exp path (bf16-capable EUP on v6e/v7x); skip if the chip
    # rejects bf16 exp lowering.
    try:
        loss6 = debiased_mmd_loss(X, Y, sig2=1.0, block_n=128, exp_dtype=jnp.bfloat16)
        jax.block_until_ready(loss6)
        assert jnp.allclose(loss6, ref1, rtol=2e-2, atol=1e-3), (loss6, ref1)
    except Exception:
        pass  # TODO(synk): bf16 exp is opt-in; older chips (v5e) may not lower it.

    jax.block_until_ready((loss1, loss2, loss3, loss4, loss5))
    print("KERNEL_OK")
</pallas_src>

<mosaic_0001>
module attributes {stable_mosaic.version = 11 : i64} {
  func.func @_mmd_tile_kernel(%arg0: i32, %arg1: i32, %arg2: memref<6xi32, #tpu.memory_space<smem>>, %arg3: memref<6xi32, #tpu.memory_space<smem>>, %arg4: memref<6xi32, #tpu.memory_space<smem>>, %arg5: memref<128x96xf32, #tpu.memory_space<vmem>>, %arg6: memref<128x96xf32, #tpu.memory_space<vmem>>, %arg7: memref<128x96xf32, #tpu.memory_space<vmem>>, %arg8: memref<128x96xf32, #tpu.memory_space<vmem>>, %arg9: memref<1x128x1xf32, #tpu.memory_space<vmem>>, %arg10: memref<1x128x1xf32, #tpu.memory_space<vmem>>, %arg11: memref<1x1x128xf32, #tpu.memory_space<vmem>>, %arg12: memref<1x1x128xf32, #tpu.memory_space<vmem>>, %arg13: memref<1x8x128xf32, #tpu.memory_space<vmem>>) attributes {dimension_semantics = [#tpu.dimension_semantics<parallel>, #tpu.dimension_semantics<arbitrary>], iteration_bounds = array<i64: 2, 3>, scalar_prefetch = 3 : i64, scratch_operands = 0 : i64, tpu.core_type = #tpu.core_type<tc>, window_params = [{transform_indices = @transform_0, window_bounds = array<i64: 128, 96>}, {transform_indices = @transform_1, window_bounds = array<i64: 128, 96>}, {transform_indices = @transform_2, window_bounds = array<i64: 128, 96>}, {transform_indices = @transform_3, window_bounds = array<i64: 128, 96>}, {transform_indices = @transform_4, window_bounds = array<i64: 1, 128, 1>}, {transform_indices = @transform_5, window_bounds = array<i64: 1, 128, 1>}, {transform_indices = @transform_6, window_bounds = array<i64: 1, 1, 128>}, {transform_indices = @transform_7, window_bounds = array<i64: 1, 1, 128>}, {transform_indices = @transform_8, window_bounds = array<i64: 1, 8, 128>}]} {
    %c3_i32 = arith.constant 3 : i32
    %0 = arith.muli %arg0, %c3_i32 : i32
    %1 = arith.addi %0, %arg1 : i32
    %2 = arith.index_cast %1 : i32 to index
    %3 = memref.load %arg2[%2] : memref<6xi32, #tpu.memory_space<smem>>
    %4 = arith.index_cast %1 : i32 to index
    %5 = memref.load %arg3[%4] : memref<6xi32, #tpu.memory_space<smem>>
    %6 = arith.index_cast %1 : i32 to index
    %7 = memref.load %arg4[%6] : memref<6xi32, #tpu.memory_space<smem>>
    %c1_i32 = arith.constant 1 : i32
    %8 = arith.cmpi eq, %7, %c1_i32 : i32
    %c0_i32 = arith.constant 0 : i32
    %9 = arith.cmpi eq, %arg1, %c0_i32 : i32
    %10 = arith.extui %9 : i1 to i32
    %c0_i32_0 = arith.constant 0 : i32
    %11 = arith.cmpi ne, %10, %c0_i32_0 : i32
    scf.if %11 {
      %cst = arith.constant 0.000000e+00 : f32
      %14 = vector.broadcast %cst : f32 to vector<8x128xf32>
      %c0 = arith.constant 0 : index
      %c0_2 = arith.constant 0 : index
      %c0_3 = arith.constant 0 : index
      %15 = vector.load %arg13[%c0, %c0_2, %c0_3] : memref<1x8x128xf32, #tpu.memory_space<vmem>>, vector<1x8x128xf32>
      %16 = vector.shape_cast %15 : vector<1x8x128xf32> to vector<8x128xf32>
      %17 = vector.shape_cast %14 : vector<8x128xf32> to vector<1x8x128xf32>
      tpu.vector_store %arg13[%c0, %c0_2, %c0_3], %17 {strides = array<i32>} : memref<1x8x128xf32, #tpu.memory_space<vmem>>, vector<1x8x128xf32>,
    } else {
    }
    %12 = arith.extui %8 : i1 to i32
    %c0_i32_1 = arith.constant 0 : i32
    %13 = arith.cmpi ne, %12, %c0_i32_1 : i32
    scf.if %13 {
      %c0 = arith.constant 0 : index
      %c0_2 = arith.constant 0 : index
      %14 = vector.load %arg5[%c0, %c0_2] : memref<128x96xf32, #tpu.memory_space<vmem>>, vector<128x96xf32>
      %cst = arith.constant 0.707106769 : f32
      %15 = vector.broadcast %cst : f32 to vector<128x96xf32>
      %16 = arith.mulf %14, %15 : vector<128x96xf32>
      %c0_3 = arith.constant 0 : index
      %c0_4 = arith.constant 0 : index
      %17 = vector.load %arg8[%c0_3, %c0_4] : memref<128x96xf32, #tpu.memory_space<vmem>>, vector<128x96xf32>
      %cst_5 = arith.constant 0.707106769 : f32
      %18 = vector.broadcast %cst_5 : f32 to vector<128x96xf32>
      %19 = arith.mulf %17, %18 : vector<128x96xf32>
      %c0_6 = arith.constant 0 : index
      %c0_7 = arith.constant 0 : index
      %c0_8 = arith.constant 0 : index
      %20 = vector.load %arg9[%c0_6, %c0_7, %c0_8] : memref<1x128x1xf32, #tpu.memory_space<vmem>>, vector<1x128x1xf32>
      %21 = vector.shape_cast %20 : vector<1x128x1xf32> to vector<128x1xf32>
      %c0_9 = arith.constant 0 : index
      %c0_10 = arith.constant 0 : index
      %c0_11 = arith.constant 0 : index
      %22 = vector.load %arg10[%c0_9, %c0_10, %c0_11] : memref<1x128x1xf32, #tpu.memory_space<vmem>>, vector<1x128x1xf32>
      %23 = vector.shape_cast %22 : vector<1x128x1xf32> to vector<128x1xf32>
      %c0_12 = arith.constant 0 : index
      %c0_13 = arith.constant 0 : index
      %c0_14 = arith.constant 0 : index
      %24 = vector.load %arg11[%c0_12, %c0_13, %c0_14] : memref<1x1x128xf32, #tpu.memory_space<vmem>>, vector<1x1x128xf32>
      %25 = vector.shape_cast %24 : vector<1x1x128xf32> to vector<1x128xf32>
      %c0_15 = arith.constant 0 : index
      %c0_16 = arith.constant 0 : index
      %c0_17 = arith.constant 0 : index
      %26 = vector.load %arg12[%c0_15, %c0_16, %c0_17] : memref<1x1x128xf32, #tpu.memory_space<vmem>>, vector<1x1x128xf32>
      %27 = vector.shape_cast %26 : vector<1x1x128xf32> to vector<1x128xf32>
      %cst_18 = arith.constant dense<0.000000e+00> : vector<128x128xf32>
      %28 = tpu.matmul %16, %19, %cst_18 {dimension_numbers = #tpu.dot_dimension_numbers<[1], [1], [0], [0], [0, 0, 1, 0], [], []>} : vector<128x96xf32>, vector<128x96xf32>, vector<128x128xf32> -> vector<128x128xf32>
      %29 = vector.broadcast %21 : vector<128x1xf32> to vector<128x128xf32>
      %30 = arith.subf %28, %29 : vector<128x128xf32>
      %31 = vector.broadcast %27 : vector<1x128xf32> to vector<128x128xf32>
      %32 = arith.subf %30, %31 : vector<128x128xf32>
      %33 = math.exp %32 : vector<128x128xf32>
      %34 = arith.cmpi ne, %3, %5 : i32
      %35 = arith.extui %34 : i1 to i32
      %c0_i32_19 = arith.constant 0 : i32
      %36 = arith.cmpi ne, %35, %c0_i32_19 : i32
      scf.if %36 {
        %c0_21 = arith.constant 0 : index
        %c0_22 = arith.constant 0 : index
        %40 = vector.load %arg6[%c0_21, %c0_22] : memref<128x96xf32, #tpu.memory_space<vmem>>, vector<128x96xf32>
        %cst_23 = arith.constant 0.707106769 : f32
        %41 = vector.broadcast %cst_23 : f32 to vector<128x96xf32>
        %42 = arith.mulf %40, %41 : vector<128x96xf32>
        %c0_24 = arith.constant 0 : index
        %c0_25 = arith.constant 0 : index
        %43 = vector.load %arg7[%c0_24, %c0_25] : memref<128x96xf32, #tpu.memory_space<vmem>>, vector<128x96xf32>
        %cst_26 = arith.constant 0.707106769 : f32
        %44 = vector.broadcast %cst_26 : f32 to vector<128x96xf32>
        %45 = arith.mulf %43, %44 : vector<128x96xf32>
        %cst_27 = arith.constant dense<0.000000e+00> : vector<128x128xf32>
        %46 = tpu.matmul %16, %42, %cst_27 {dimension_numbers = #tpu.dot_dimension_numbers<[1], [1], [0], [0], [0, 0, 1, 0], [], []>} : vector<128x96xf32>, vector<128x96xf32>, vector<128x128xf32> -> vector<128x128xf32>
        %47 = vector.broadcast %21 : vector<128x1xf32> to vector<128x128xf32>
        %48 = arith.subf %46, %47 : vector<128x128xf32>
        %49 = vector.broadcast %25 : vector<1x128xf32> to vector<128x128xf32>
        %50 = arith.subf %48, %49 : vector<128x128xf32>
        %51 = math.exp %50 : vector<128x128xf32>
        %cst_28 = arith.constant dense<0.000000e+00> : vector<128x128xf32>
        %52 = tpu.matmul %45, %19, %cst_28 {dimension_numbers = #tpu.dot_dimension_numbers<[1], [1], [0], [0], [0, 0, 1, 0], [], []>} : vector<128x96xf32>, vector<128x96xf32>, vector<128x128xf32> -> vector<128x128xf32>
        %53 = vector.broadcast %23 : vector<128x1xf32> to vector<128x128xf32>
        %54 = arith.subf %52, %53 : vector<128x128xf32>
        %55 = vector.broadcast %27 : vector<1x128xf32> to vector<128x128xf32>
        %56 = arith.subf %54, %55 : vector<128x128xf32>
        %57 = math.exp %56 : vector<128x128xf32>
        %cst_29 = arith.constant dense<0.000000e+00> : vector<128x128xf32>
        %58 = tpu.matmul %45, %42, %cst_29 {dimension_numbers = #tpu.dot_dimension_numbers<[1], [1], [0], [0], [0, 0, 1, 0], [], []>} : vector<128x96xf32>, vector<128x96xf32>, vector<128x128xf32> -> vector<128x128xf32>
        %59 = vector.broadcast %23 : vector<128x1xf32> to vector<128x128xf32>
        %60 = arith.subf %58, %59 : vector<128x128xf32>
        %61 = vector.broadcast %25 : vector<1x128xf32> to vector<128x128xf32>
        %62 = arith.subf %60, %61 : vector<128x128xf32>
        %63 = math.exp %62 : vector<128x128xf32>
        %64 = arith.addf %51, %57 : vector<128x128xf32>
        %65 = arith.subf %64, %33 : vector<128x128xf32>
        %66 = arith.subf %65, %63 : vector<128x128xf32>
        %67 = vector.shape_cast %66 : vector<128x128xf32> to vector<16x8x128xf32>
        %cst_30 = arith.constant dense<0.000000e+00> : vector<8x128xf32>
        %68 = vector.multi_reduction <add>, %67, %cst_30 [0] : vector<16x8x128xf32> to vector<8x128xf32>
        %c0_31 = arith.constant 0 : index
        %c0_32 = arith.constant 0 : index
        %c0_33 = arith.constant 0 : index
        %69 = vector.load %arg13[%c0_31, %c0_32, %c0_33] : memref<1x8x128xf32, #tpu.memory_space<vmem>>, vector<1x8x128xf32>
        %70 = vector.shape_cast %69 : vector<1x8x128xf32> to vector<8x128xf32>
        %cst_34 = arith.constant 2.000000e+00 : f32
        %71 = vector.broadcast %cst_34 : f32 to vector<8x128xf32>
        %72 = arith.mulf %71, %68 : vector<8x128xf32>
        %73 = arith.addf %70, %72 : vector<8x128xf32>
        %c0_35 = arith.constant 0 : index
        %c0_36 = arith.constant 0 : index
        %c0_37 = arith.constant 0 : index
        %74 = vector.load %arg13[%c0_35, %c0_36, %c0_37] : memref<1x8x128xf32, #tpu.memory_space<vmem>>, vector<1x8x128xf32>
        %75 = vector.shape_cast %74 : vector<1x8x128xf32> to vector<8x128xf32>
        %76 = vector.shape_cast %73 : vector<8x128xf32> to vector<1x8x128xf32>
        tpu.vector_store %arg13[%c0_35, %c0_36, %c0_37], %76 {strides = array<i32>} : memref<1x8x128xf32, #tpu.memory_space<vmem>>, vector<1x8x128xf32>,
      } else {
      }
      %37 = arith.cmpi eq, %3, %5 : i32
      %38 = arith.extui %37 : i1 to i32
      %c0_i32_20 = arith.constant 0 : i32
      %39 = arith.cmpi ne, %38, %c0_i32_20 : i32
      scf.if %39 {
        %cst_21 = arith.constant dense<0.000000e+00> : vector<128x128xf32>
        %40 = tpu.matmul %16, %16, %cst_21 {dimension_numbers = #tpu.dot_dimension_numbers<[1], [1], [0], [0], [0, 0, 1, 0], [], []>} : vector<128x96xf32>, vector<128x96xf32>, vector<128x128xf32> -> vector<128x128xf32>
        %41 = vector.broadcast %21 : vector<128x1xf32> to vector<128x128xf32>
        %42 = arith.subf %40, %41 : vector<128x128xf32>
        %43 = vector.broadcast %25 : vector<1x128xf32> to vector<128x128xf32>
        %44 = arith.subf %42, %43 : vector<128x128xf32>
        %45 = math.exp %44 : vector<128x128xf32>
        %cst_22 = arith.constant dense<0.000000e+00> : vector<128x128xf32>
        %46 = tpu.matmul %19, %19, %cst_22 {dimension_numbers = #tpu.dot_dimension_numbers<[1], [1], [0], [0], [0, 0, 1, 0], [], []>} : vector<128x96xf32>, vector<128x96xf32>, vector<128x128xf32> -> vector<128x128xf32>
        %47 = vector.broadcast %23 : vector<128x1xf32> to vector<128x128xf32>
        %48 = arith.subf %46, %47 : vector<128x128xf32>
        %49 = vector.broadcast %27 : vector<1x128xf32> to vector<128x128xf32>
        %50 = arith.subf %48, %49 : vector<128x128xf32>
        %51 = math.exp %50 : vector<128x128xf32>
        %52 = arith.addf %45, %51 : vector<128x128xf32>
        %cst_23 = arith.constant 2.000000e+00 : f32
        %53 = vector.broadcast %cst_23 : f32 to vector<128x128xf32>
        %54 = arith.mulf %53, %33 : vector<128x128xf32>
        %55 = arith.subf %52, %54 : vector<128x128xf32>
        %56 = tpu.iota {dimensions = array<i32: 0>} : vector<128x128xi32>
        %57 = tpu.iota {dimensions = array<i32: 1>} : vector<128x128xi32>
        %58 = arith.cmpi eq, %56, %57 : vector<128x128xi32>
        %cst_24 = arith.constant 0.000000e+00 : f32
        %59 = vector.broadcast %cst_24 : f32 to vector<128x128xf32>
        %60 = arith.select %58, %59, %55 : vector<128x128xi1>, vector<128x128xf32>
        %61 = vector.shape_cast %60 : vector<128x128xf32> to vector<16x8x128xf32>
        %cst_25 = arith.constant dense<0.000000e+00> : vector<8x128xf32>
        %62 = vector.multi_reduction <add>, %61, %cst_25 [0] : vector<16x8x128xf32> to vector<8x128xf32>
        %c0_26 = arith.constant 0 : index
        %c0_27 = arith.constant 0 : index
        %c0_28 = arith.constant 0 : index
        %63 = vector.load %arg13[%c0_26, %c0_27, %c0_28] : memref<1x8x128xf32, #tpu.memory_space<vmem>>, vector<1x8x128xf32>
        %64 = vector.shape_cast %63 : vector<1x8x128xf32> to vector<8x128xf32>
        %65 = arith.addf %64, %62 : vector<8x128xf32>
        %c0_29 = arith.constant 0 : index
        %c0_30 = arith.constant 0 : index
        %c0_31 = arith.constant 0 : index
        %66 = vector.load %arg13[%c0_29, %c0_30, %c0_31] : memref<1x8x128xf32, #tpu.memory_space<vmem>>, vector<1x8x128xf32>
        %67 = vector.shape_cast %66 : vector<1x8x128xf32> to vector<8x128xf32>
        %68 = vector.shape_cast %65 : vector<8x128xf32> to vector<1x8x128xf32>
        tpu.vector_store %arg13[%c0_29, %c0_30, %c0_31], %68 {strides = array<i32>} : memref<1x8x128xf32, #tpu.memory_space<vmem>>, vector<1x8x128xf32>,
      } else {
      }
    } else {
    }
    return
  }
  func.func @transform_0(%arg0: i32, %arg1: i32, %arg2: memref<6xi32, #tpu.memory_space<smem>>, %arg3: memref<6xi32, #tpu.memory_space<smem>>, %arg4: memref<6xi32, #tpu.memory_space<smem>>) -> (i32, i32) {
    %c3_i32 = arith.constant 3 : i32
    %0 = arith.muli %arg0, %c3_i32 : i32
    %1 = arith.addi %0, %arg1 : i32
    %2 = arith.index_cast %1 : i32 to index
    %3 = memref.load %arg2[%2] : memref<6xi32, #tpu.memory_space<smem>>
    %c0_i32 = arith.constant 0 : i32
    %c0_i32_0 = arith.constant 0 : i32
    return %3, %c0_i32 : i32, i32
  }
  func.func @transform_1(%arg0: i32, %arg1: i32, %arg2: memref<6xi32, #tpu.memory_space<smem>>, %arg3: memref<6xi32, #tpu.memory_space<smem>>, %arg4: memref<6xi32, #tpu.memory_space<smem>>) -> (i32, i32) {
    %c3_i32 = arith.constant 3 : i32
    %0 = arith.muli %arg0, %c3_i32 : i32
    %1 = arith.addi %0, %arg1 : i32
    %2 = arith.index_cast %1 : i32 to index
    %3 = memref.load %arg3[%2] : memref<6xi32, #tpu.memory_space<smem>>
    %c0_i32 = arith.constant 0 : i32
    %c0_i32_0 = arith.constant 0 : i32
    return %3, %c0_i32 : i32, i32
  }
  func.func @transform_2(%arg0: i32, %arg1: i32, %arg2: memref<6xi32, #tpu.memory_space<smem>>, %arg3: memref<6xi32, #tpu.memory_space<smem>>, %arg4: memref<6xi32, #tpu.memory_space<smem>>) -> (i32, i32) {
    %c3_i32 = arith.constant 3 : i32
    %0 = arith.muli %arg0, %c3_i32 : i32
    %1 = arith.addi %0, %arg1 : i32
    %2 = arith.index_cast %1 : i32 to index
    %3 = memref.load %arg2[%2] : memref<6xi32, #tpu.memory_space<smem>>
    %c0_i32 = arith.constant 0 : i32
    %c0_i32_0 = arith.constant 0 : i32
    return %3, %c0_i32 : i32, i32
  }
  func.func @transform_3(%arg0: i32, %arg1: i32, %arg2: memref<6xi32, #tpu.memory_space<smem>>, %arg3: memref<6xi32, #tpu.memory_space<smem>>, %arg4: memref<6xi32, #tpu.memory_space<smem>>) -> (i32, i32) {
    %c3_i32 = arith.constant 3 : i32
    %0 = arith.muli %arg0, %c3_i32 : i32
    %1 = arith.addi %0, %arg1 : i32
    %2 = arith.index_cast %1 : i32 to index
    %3 = memref.load %arg3[%2] : memref<6xi32, #tpu.memory_space<smem>>
    %c0_i32 = arith.constant 0 : i32
    %c0_i32_0 = arith.constant 0 : i32
    return %3, %c0_i32 : i32, i32
  }
  func.func @transform_4(%arg0: i32, %arg1: i32, %arg2: memref<6xi32, #tpu.memory_space<smem>>, %arg3: memref<6xi32, #tpu.memory_space<smem>>, %arg4: memref<6xi32, #tpu.memory_space<smem>>) -> (i32, i32, i32) {
    %c3_i32 = arith.constant 3 : i32
    %0 = arith.muli %arg0, %c3_i32 : i32
    %1 = arith.addi %0, %arg1 : i32
    %2 = arith.index_cast %1 : i32 to index
    %3 = memref.load %arg2[%2] : memref<6xi32, #tpu.memory_space<smem>>
    %c0_i32 = arith.constant 0 : i32
    %c0_i32_0 = arith.constant 0 : i32
    %c0_i32_1 = arith.constant 0 : i32
    return %3, %c0_i32, %c0_i32_0 : i32, i32, i32
  }
  func.func @transform_5(%arg0: i32, %arg1: i32, %arg2: memref<6xi32, #tpu.memory_space<smem>>, %arg3: memref<6xi32, #tpu.memory_space<smem>>, %arg4: memref<6xi32, #tpu.memory_space<smem>>) -> (i32, i32, i32) {
    %c3_i32 = arith.constant 3 : i32
    %0 = arith.muli %arg0, %c3_i32 : i32
    %1 = arith.addi %0, %arg1 : i32
    %2 = arith.index_cast %1 : i32 to index
    %3 = memref.load %arg2[%2] : memref<6xi32, #tpu.memory_space<smem>>
    %c0_i32 = arith.constant 0 : i32
    %c0_i32_0 = arith.constant 0 : i32
    %c0_i32_1 = arith.constant 0 : i32
    return %3, %c0_i32, %c0_i32_0 : i32, i32, i32
  }
  func.func @transform_6(%arg0: i32, %arg1: i32, %arg2: memref<6xi32, #tpu.memory_space<smem>>, %arg3: memref<6xi32, #tpu.memory_space<smem>>, %arg4: memref<6xi32, #tpu.memory_space<smem>>) -> (i32, i32, i32) {
    %c3_i32 = arith.constant 3 : i32
    %0 = arith.muli %arg0, %c3_i32 : i32
    %1 = arith.addi %0, %arg1 : i32
    %2 = arith.index_cast %1 : i32 to index
    %3 = memref.load %arg3[%2] : memref<6xi32, #tpu.memory_space<smem>>
    %c0_i32 = arith.constant 0 : i32
    %c0_i32_0 = arith.constant 0 : i32
    %c0_i32_1 = arith.constant 0 : i32
    return %3, %c0_i32, %c0_i32_0 : i32, i32, i32
  }
  func.func @transform_7(%arg0: i32, %arg1: i32, %arg2: memref<6xi32, #tpu.memory_space<smem>>, %arg3: memref<6xi32, #tpu.memory_space<smem>>, %arg4: memref<6xi32, #tpu.memory_space<smem>>) -> (i32, i32, i32) {
    %c3_i32 = arith.constant 3 : i32
    %0 = arith.muli %arg0, %c3_i32 : i32
    %1 = arith.addi %0, %arg1 : i32
    %2 = arith.index_cast %1 : i32 to index
    %3 = memref.load %arg3[%2] : memref<6xi32, #tpu.memory_space<smem>>
    %c0_i32 = arith.constant 0 : i32
    %c0_i32_0 = arith.constant 0 : i32
    %c0_i32_1 = arith.constant 0 : i32
    return %3, %c0_i32, %c0_i32_0 : i32, i32, i32
  }
  func.func @transform_8(%arg0: i32, %arg1: i32, %arg2: memref<6xi32, #tpu.memory_space<smem>>, %arg3: memref<6xi32, #tpu.memory_space<smem>>, %arg4: memref<6xi32, #tpu.memory_space<smem>>) -> (i32, i32, i32) {
    %c0_i32 = arith.constant 0 : i32
    %c0_i32_0 = arith.constant 0 : i32
    %c0_i32_1 = arith.constant 0 : i32
    return %arg0, %c0_i32, %c0_i32_0 : i32, i32, i32
  }
}

</mosaic_0001>

<llo_original>
// kernel: tpu_custom_call.1
$region0: #{tpu_custom_call.1}
  #allocation0 [shape = 'u32[]', space=smem, size = 0x4, offset = 0x4, fixed_abs, tag = 'smem constant byte address 0x4 - core index']
  #allocation1 [shape = 'u32[144,128]{1,0:T(1,128)}', space=vmem, size = 0x12000, scoped, tag = 'internal scratch']
  #allocation2 [shape = 's32[1]{0}', space=sflag, size = 0x4, scoped, tag = 'scoped memory for tpu_custom_call.1']
  #allocation3 [shape = 'u8[512]{0}', space=smem, size = 0x200, scoped, tag = 'prefetched SMEM operand 0']
  #allocation4 [shape = 'u8[512]{0}', space=smem, size = 0x200, scoped, tag = 'prefetched SMEM operand 1']
  #allocation5 [shape = 'u8[512]{0}', space=smem, size = 0x200, scoped, tag = 'prefetched SMEM operand 2']
  %s0 = inlined_call_operand.vmem [shape: s32[6], index: 0, kind: input, shape index: {}]
  %s1 = inlined_call_operand.vmem [shape: s32[6], index: 1, kind: input, shape index: {}]
  %s2 = inlined_call_operand.vmem [shape: s32[6], index: 2, kind: input, shape index: {}]
  %s3 = inlined_call_operand.vmem [shape: f32[384,96], index: 3, kind: input, shape index: {}]
  %s4 = inlined_call_operand.vmem [shape: f32[384,96], index: 4, kind: input, shape index: {}]
  %s5 = inlined_call_operand.vmem [shape: f32[384,96], index: 5, kind: input, shape index: {}]
  %s6 = inlined_call_operand.vmem [shape: f32[384,96], index: 6, kind: input, shape index: {}]
  %s7 = inlined_call_operand.vmem [shape: f32[3,128,1], index: 7, kind: input, shape index: {}]
  %s8 = inlined_call_operand.vmem [shape: f32[3,128,1], index: 8, kind: input, shape index: {}]
  %s9 = inlined_call_operand.vmem [shape: f32[3,1,128], index: 9, kind: input, shape index: {}]
  %s10 = inlined_call_operand.vmem [shape: f32[3,1,128], index: 10, kind: input, shape index: {}]
  %s11 = inlined_call_operand.hbm [shape: f32[2,8,128], index: 11, kind: output, shape index: {}]
  %s12 = sld [smem:[#allocation0]]
  $region81: #{tpu_custom_call.1} parent=0
    _
  %s14 = ssub.s32 1, %s12
  %s15 = scalar_select 0, %s14, %s12
  %s16 = sshll.u32 %s0, 4
  %s17 = int_to_ptr.vmem [resolvable:$true] %s16
  %19 = dma.vmem_to_smem %s17, 16, [#allocation3], [#allocation2]
  %s20 = sshll.u32 %s1, 4
  %s21 = int_to_ptr.vmem [resolvable:$true] %s20
  %23 = dma.vmem_to_smem %s21, 16, [#allocation4], [#allocation2]
  %s24 = sshll.u32 %s2, 4
  %s25 = int_to_ptr.vmem [resolvable:$true] %s24
  %27 = dma.vmem_to_smem %s25, 16, [#allocation5], [#allocation2]
  %28 = dma.done [#allocation2], 48
  %29 = sfence
  $region1: #{tpu_custom_call.1} parent=0
    #allocation6 [shape = 'u8[8192]{0}', space=vmem, size = 0x2000, scoped, tag = 'output window, operand 0']
    #allocation7 [shape = 's32[2]{0}', space=sflag, size = 0x8, scoped, tag = 'scoped memory for tpu_custom_call.1']
    %30 = vsyncpa [#allocation7], 0
    %s31 = scalar_lea.sflag [#allocation7], 1
    %32 = vsyncpa %s31, 0
    loop: start=0, step=1, limit=8
    $region2: #{tpu_custom_call.1} parent=1 // loop_pre_header
      _
    $region3: #{tpu_custom_call.1} parent=1 // loop_header
      %s34 = sphi 0, %s38
      %p35 = scmp.ge.s32.totalorder %s34, 8
      %s41 = sphi 0, %s53
      %s42 = sphi 0, %s49
      %s43 = sphi 0, %s41
      %s44 = sphi 0, %s42
      %s45 = sphi 0, %s43
      %s46 = sphi 0, %s44
      %s62 = sphi 0, %s64
      %s65 = sphi 0, %s62
      %s66 = sphi 0, %s65
      %s82 = sphi 0, %s66
      %s94 = sphi 0, %s96
      %s97 = sphi 0, %s94
      %s98 = sphi 0, %s97
      %s114 = sphi 0, %s98
      %s126 = sphi 0, %s128
      %s129 = sphi 0, %s126
      %s130 = sphi 0, %s129
      %s146 = sphi 0, %s130
      %s158 = sphi 0, %s160
      %s161 = sphi 0, %s158
      %s162 = sphi 0, %s161
      %s178 = sphi 0, %s162
      %s190 = sphi 0, %s192
      %s193 = sphi 0, %s190
      %s194 = sphi 0, %s193
      %s210 = sphi 0, %s194
      %s222 = sphi 0, %s224
      %s225 = sphi 0, %s222
      %s226 = sphi 0, %s225
      %s242 = sphi 0, %s226
      %s254 = sphi 0, %s256
      %s257 = sphi 0, %s254
      %s258 = sphi 0, %s257
      %s274 = sphi 0, %s258
      %s286 = sphi 0, %s288
      %s289 = sphi 0, %s286
      %s290 = sphi 0, %s289
      %s306 = sphi 0, %s290
      %s312 = sphi 0, %s314
      %s315 = sphi 0, %s312
      %s316 = sphi 0, %s315
      %s332 = sphi 0, %s316
    $region4: #{tpu_custom_call.1} parent=1 // loop_header_branch
      %37 = sbr.rel (%p35) target = $region8
    $region5: #{tpu_custom_call.1} parent=1 // loop_body
      %s39 = ssub.s32 %s34, 1
      %s40 = ssub.s32 %s34, 2
      %s47 = sadd.s32 1, %s42
      %p48 = scmp.ge.s32.totalorder %s47, 3
      %s49 = scalar_select %p48, 0, %s47
      %s50 = sadd.s32 1, %s41
      %s51 = scalar_select %p48, %s50, %s41
      %p52 = scmp.ge.s32.totalorder %s51, 2
      %s53 = scalar_select %p52, 0, %s51
      %s54 = smul.u32 %s41, 3
      %s55 = sadd.s32 %s54, %s42
      %s56 = sld [smem:[#allocation3 + %s55]]
      %s57 = smul.u32 %s53, 3
      %s58 = sadd.s32 %s57, %s49
      %s59 = sld [smem:[#allocation3 + %s58]]
      %s60 = ssub.s32 %s56, %s59
      %p61 = scmp.eq.s32.totalorder %s60, 0
      %s63 = sadd.s32 %s62, 1
      %s64 = scalar_select %p61, %s62, %s63
      %p67 = pneg %p61
      %p68 = scmp.eq.s32.totalorder %s34, 5
      %p69 = por %p67, %p68
      %p70 = scmp.ne.s32.totalorder %s62, %s65
      %p71 = scmp.eq.s32.totalorder %s34, 0
      %p72 = por %p70, %p71
      %p73 = scmp.ne.s32.totalorder %s62, %s65
      %p74 = scmp.eq.s32.totalorder %s39, 5
      %p75 = por %p73, %p74
      %p76 = scmp.ne.s32.totalorder %s65, %s66
      %p77 = scmp.eq.s32.totalorder %s39, 0
      %p78 = por %p76, %p77
      %p79 = scmp.ne.s32.totalorder %s65, %s66
      %p80 = scmp.eq.s32.totalorder %s40, 5
      %p81 = por %p79, %p80
      %p83 = scmp.ne.s32.totalorder %s66, %s82
      %p84 = scmp.eq.s32.totalorder %s40, 0
      %p85 = por %p83, %p84
      %s86 = smul.u32 %s41, 3
      %s87 = sadd.s32 %s86, %s42
      %s88 = sld [smem:[#allocation4 + %s87]]
      %s89 = smul.u32 %s53, 3
      %s90 = sadd.s32 %s89, %s49
      %s91 = sld [smem:[#allocation4 + %s90]]
      %s92 = ssub.s32 %s88, %s91
      %p93 = scmp.eq.s32.totalorder %s92, 0
      %s95 = sadd.s32 %s94, 1
      %s96 = scalar_select %p93, %s94, %s95
      %p99 = pneg %p93
      %p100 = scmp.eq.s32.totalorder %s34, 5
      %p101 = por %p99, %p100
      %p102 = scmp.ne.s32.totalorder %s94, %s97
      %p103 = scmp.eq.s32.totalorder %s34, 0
      %p104 = por %p102, %p103
      %p105 = scmp.ne.s32.totalorder %s94, %s97
      %p106 = scmp.eq.s32.totalorder %s39, 5
      %p107 = por %p105, %p106
      %p108 = scmp.ne.s32.totalorder %s97, %s98
      %p109 = scmp.eq.s32.totalorder %s39, 0
      %p110 = por %p108, %p109
      %p111 = scmp.ne.s32.totalorder %s97, %s98
      %p112 = scmp.eq.s32.totalorder %s40, 5
      %p113 = por %p111, %p112
      %p115 = scmp.ne.s32.totalorder %s98, %s114
      %p116 = scmp.eq.s32.totalorder %s40, 0
      %p117 = por %p115, %p116
      %s118 = smul.u32 %s41, 3
      %s119 = sadd.s32 %s118, %s42
      %s120 = sld [smem:[#allocation3 + %s119]]
      %s121 = smul.u32 %s53, 3
      %s122 = sadd.s32 %s121, %s49
      %s123 = sld [smem:[#allocation3 + %s122]]
      %s124 = ssub.s32 %s120, %s123
      %p125 = scmp.eq.s32.totalorder %s124, 0
      %s127 = sadd.s32 %s126, 1
      %s128 = scalar_select %p125, %s126, %s127
      %p131 = pneg %p125
      %p132 = scmp.eq.s32.totalorder %s34, 5
      %p133 = por %p131, %p132
      %p134 = scmp.ne.s32.totalorder %s126, %s129
      %p135 = scmp.eq.s32.totalorder %s34, 0
      %p136 = por %p134, %p135
      %p137 = scmp.ne.s32.totalorder %s126, %s129
      %p138 = scmp.eq.s32.totalorder %s39, 5
      %p139 = por %p137, %p138
      %p140 = scmp.ne.s32.totalorder %s129, %s130
      %p141 = scmp.eq.s32.totalorder %s39, 0
      %p142 = por %p140, %p141
      %p143 = scmp.ne.s32.totalorder %s129, %s130
      %p144 = scmp.eq.s32.totalorder %s40, 5
      %p145 = por %p143, %p144
      %p147 = scmp.ne.s32.totalorder %s130, %s146
      %p148 = scmp.eq.s32.totalorder %s40, 0
      %p149 = por %p147, %p148
      %s150 = smul.u32 %s41, 3
      %s151 = sadd.s32 %s150, %s42
      %s152 = sld [smem:[#allocation4 + %s151]]
      %s153 = smul.u32 %s53, 3
      %s154 = sadd.s32 %s153, %s49
      %s155 = sld [smem:[#allocation4 + %s154]]
      %s156 = ssub.s32 %s152, %s155
      %p157 = scmp.eq.s32.totalorder %s156, 0
      %s159 = sadd.s32 %s158, 1
      %s160 = scalar_select %p157, %s158, %s159
      %p163 = pneg %p157
      %p164 = scmp.eq.s32.totalorder %s34, 5
      %p165 = por %p163, %p164
      %p166 = scmp.ne.s32.totalorder %s158, %s161
      %p167 = scmp.eq.s32.totalorder %s34, 0
      %p168 = por %p166, %p167
      %p169 = scmp.ne.s32.totalorder %s158, %s161
      %p170 = scmp.eq.s32.totalorder %s39, 5
      %p171 = por %p169, %p170
      %p172 = scmp.ne.s32.totalorder %s161, %s162
      %p173 = scmp.eq.s32.totalorder %s39, 0
      %p174 = por %p172, %p173
      %p175 = scmp.ne.s32.totalorder %s161, %s162
      %p176 = scmp.eq.s32.totalorder %s40, 5
      %p177 = por %p175, %p176
      %p179 = scmp.ne.s32.totalorder %s162, %s178
      %p180 = scmp.eq.s32.totalorder %s40, 0
      %p181 = por %p179, %p180
      %s182 = smul.u32 %s41, 3
      %s183 = sadd.s32 %s182, %s42
      %s184 = sld [smem:[#allocation3 + %s183]]
      %s185 = smul.u32 %s53, 3
      %s186 = sadd.s32 %s185, %s49
      %s187 = sld [smem:[#allocation3 + %s186]]
      %s188 = ssub.s32 %s184, %s187
      %p189 = scmp.eq.s32.totalorder %s188, 0
      %s191 = sadd.s32 %s190, 1
      %s192 = scalar_select %p189, %s190, %s191
      %p195 = pneg %p189
      %p196 = scmp.eq.s32.totalorder %s34, 5
      %p197 = por %p195, %p196
      %p198 = scmp.ne.s32.totalorder %s190, %s193
      %p199 = scmp.eq.s32.totalorder %s34, 0
      %p200 = por %p198, %p199
      %p201 = scmp.ne.s32.totalorder %s190, %s193
      %p202 = scmp.eq.s32.totalorder %s39, 5
      %p203 = por %p201, %p202
      %p204 = scmp.ne.s32.totalorder %s193, %s194
      %p205 = scmp.eq.s32.totalorder %s39, 0
      %p206 = por %p204, %p205
      %p207 = scmp.ne.s32.totalorder %s193, %s194
      %p208 = scmp.eq.s32.totalorder %s40, 5
      %p209 = por %p207, %p208
      %p211 = scmp.ne.s32.totalorder %s194, %s210
      %p212 = scmp.eq.s32.totalorder %s40, 0
      %p213 = por %p211, %p212
      %s214 = smul.u32 %s41, 3
      %s215 = sadd.s32 %s214, %s42
      %s216 = sld [smem:[#allocation3 + %s215]]
      %s217 = smul.u32 %s53, 3
      %s218 = sadd.s32 %s217, %s49
      %s219 = sld [smem:[#allocation3 + %s218]]
      %s220 = ssub.s32 %s216, %s219
      %p221 = scmp.eq.s32.totalorder %s220, 0
      %s223 = sadd.s32 %s222, 1
      %s224 = scalar_select %p221, %s222, %s223
      %p227 = pneg %p221
      %p228 = scmp.eq.s32.totalorder %s34, 5
      %p229 = por %p227, %p228
      %p230 = scmp.ne.s32.totalorder %s222, %s225
      %p231 = scmp.eq.s32.totalorder %s34, 0
      %p232 = por %p230, %p231
      %p233 = scmp.ne.s32.totalorder %s222, %s225
      %p234 = scmp.eq.s32.totalorder %s39, 5
      %p235 = por %p233, %p234
      %p236 = scmp.ne.s32.totalorder %s225, %s226
      %p237 = scmp.eq.s32.totalorder %s39, 0
      %p238 = por %p236, %p237
      %p239 = scmp.ne.s32.totalorder %s225, %s226
      %p240 = scmp.eq.s32.totalorder %s40, 5
      %p241 = por %p239, %p240
      %p243 = scmp.ne.s32.totalorder %s226, %s242
      %p244 = scmp.eq.s32.totalorder %s40, 0
      %p245 = por %p243, %p244
      %s246 = smul.u32 %s41, 3
      %s247 = sadd.s32 %s246, %s42
      %s248 = sld [smem:[#allocation4 + %s247]]
      %s249 = smul.u32 %s53, 3
      %s250 = sadd.s32 %s249, %s49
      %s251 = sld [smem:[#allocation4 + %s250]]
      %s252 = ssub.s32 %s248, %s251
      %p253 = scmp.eq.s32.totalorder %s252, 0
      %s255 = sadd.s32 %s254, 1
      %s256 = scalar_select %p253, %s254, %s255
      %p259 = pneg %p253
      %p260 = scmp.eq.s32.totalorder %s34, 5
      %p261 = por %p259, %p260
      %p262 = scmp.ne.s32.totalorder %s254, %s257
      %p263 = scmp.eq.s32.totalorder %s34, 0
      %p264 = por %p262, %p263
      %p265 = scmp.ne.s32.totalorder %s254, %s257
      %p266 = scmp.eq.s32.totalorder %s39, 5
      %p267 = por %p265, %p266
      %p268 = scmp.ne.s32.totalorder %s257, %s258
      %p269 = scmp.eq.s32.totalorder %s39, 0
      %p270 = por %p268, %p269
      %p271 = scmp.ne.s32.totalorder %s257, %s258
      %p272 = scmp.eq.s32.totalorder %s40, 5
      %p273 = por %p271, %p272
      %p275 = scmp.ne.s32.totalorder %s258, %s274
      %p276 = scmp.eq.s32.totalorder %s40, 0
      %p277 = por %p275, %p276
      %s278 = smul.u32 %s41, 3
      %s279 = sadd.s32 %s278, %s42
      %s280 = sld [smem:[#allocation4 + %s279]]
      %s281 = smul.u32 %s53, 3
      %s282 = sadd.s32 %s281, %s49
      %s283 = sld [smem:[#allocation4 + %s282]]
      %s284 = ssub.s32 %s280, %s283
      %p285 = scmp.eq.s32.totalorder %s284, 0
      %s287 = sadd.s32 %s286, 1
      %s288 = scalar_select %p285, %s286, %s287
      %p291 = pneg %p285
      %p292 = scmp.eq.s32.totalorder %s34, 5
      %p293 = por %p291, %p292
      %p294 = scmp.ne.s32.totalorder %s286, %s289
      %p295 = scmp.eq.s32.totalorder %s34, 0
      %p296 = por %p294, %p295
      %p297 = scmp.ne.s32.totalorder %s286, %s289
      %p298 = scmp.eq.s32.totalorder %s39, 5
      %p299 = por %p297, %p298
      %p300 = scmp.ne.s32.totalorder %s289, %s290
      %p301 = scmp.eq.s32.totalorder %s39, 0
      %p302 = por %p300, %p301
      %p303 = scmp.ne.s32.totalorder %s289, %s290
      %p304 = scmp.eq.s32.totalorder %s40, 5
      %p305 = por %p303, %p304
      %p307 = scmp.ne.s32.totalorder %s290, %s306
      %p308 = scmp.eq.s32.totalorder %s40, 0
      %p309 = por %p307, %p308
      %s310 = ssub.s32 %s41, %s53
      %p311 = scmp.eq.s32.totalorder %s310, 0
      %s313 = sadd.s32 %s312, 1
      %s314 = scalar_select %p311, %s312, %s313
      %p317 = pneg %p311
      %p318 = scmp.eq.s32.totalorder %s34, 5
      %p319 = por %p317, %p318
      %p320 = scmp.ne.s32.totalorder %s312, %s315
      %p321 = scmp.eq.s32.totalorder %s34, 0
      %p322 = por %p320, %p321
      %p323 = scmp.ne.s32.totalorder %s312, %s315
      %p324 = scmp.eq.s32.totalorder %s39, 5
      %p325 = por %p323, %p324
      %p326 = scmp.ne.s32.totalorder %s315, %s316
      %p327 = scmp.eq.s32.totalorder %s39, 0
      %p328 = por %p326, %p327
      %p329 = scmp.ne.s32.totalorder %s315, %s316
      %p330 = scmp.eq.s32.totalorder %s40, 5
      %p331 = por %p329, %p330
      %p333 = scmp.ne.s32.totalorder %s316, %s332
      %p334 = scmp.eq.s32.totalorder %s40, 0
      %p335 = por %p333, %p334
      %p336 = scmp.le.s32.totalorder 1, %s34
      %p337 = scmp.lt.s32.totalorder %s34, 7
      %p338 = pnand %p336, %p337
      %p339 = pneg %p338
      // Predicated region
      $region9: #{tpu_custom_call.1} parent=5 // pred_check
        _
      $region10: #{tpu_custom_call.1} parent=5 // pred_check_branch
        %341 = sbr.rel (%p338) target = $region12
      $region11: #{tpu_custom_call.1} parent=5 // pred_region
        %s342 = ssub.s32 %s34, 1
      $region12: #{tpu_custom_call.1} parent=5 // pred_fallthru
        _
      %p343 = scmp.lt.s32.totalorder %s34, 6
      // Predicated region
      $region13: #{tpu_custom_call.1} parent=5 // pred_check
        %p344 = pneg %p343
      $region14: #{tpu_custom_call.1} parent=5 // pred_check_branch
        %346 = sbr.rel (%p344) target = $region16
      $region15: #{tpu_custom_call.1} parent=5 // pred_region
        // Predicated region
        $region17: #{tpu_custom_call.1} parent=15 // pred_check
          %p347 = pneg %p72
        $region18: #{tpu_custom_call.1} parent=15 // pred_check_branch
          %349 = sbr.rel (%p347) target = $region20
        $region19: #{tpu_custom_call.1} parent=15 // pred_region
          %s350 = smul.u32 %s41, 3
          %s351 = sadd.s32 %s350, %s42
          %s352 = sld [smem:[#allocation3 + %s351]]
          %s353 = smul.u32 16, %s352
          %p354 = scmp.lt.s32.totalorder %s353, 47
          %s355 = scalar_select %p354, %s353, 47
          %s356 = smul.addr %s355, 8
          %s357 = scalar_lea.vmem %s3, %s356
          %s358 = smul.u32 %s41, 3
          %s359 = sadd.s32 %s358, %s42
          %s360 = sld [smem:[#allocation3 + %s359]]
          %s361 = smul.u32 16, %s360
        $region20: #{tpu_custom_call.1} parent=15 // pred_fallthru
          _
        // Predicated region
        $region21: #{tpu_custom_call.1} parent=15 // pred_check
          %p362 = pneg %p104
        $region22: #{tpu_custom_call.1} parent=15 // pred_check_branch
          %364 = sbr.rel (%p362) target = $region24
        $region23: #{tpu_custom_call.1} parent=15 // pred_region
          %s365 = smul.u32 %s41, 3
          %s366 = sadd.s32 %s365, %s42
          %s367 = sld [smem:[#allocation4 + %s366]]
          %s368 = smul.u32 16, %s367
          %p369 = scmp.lt.s32.totalorder %s368, 47
          %s370 = scalar_select %p369, %s368, 47
          %s371 = smul.addr %s370, 8
          %s372 = scalar_lea.vmem %s4, %s371
          %s373 = smul.u32 %s41, 3
          %s374 = sadd.s32 %s373, %s42
          %s375 = sld [smem:[#allocation4 + %s374]]
          %s376 = smul.u32 16, %s375
        $region24: #{tpu_custom_call.1} parent=15 // pred_fallthru
          _
        // Predicated region
        $region25: #{tpu_custom_call.1} parent=15 // pred_check
          %p377 = pneg %p136
        $region26: #{tpu_custom_call.1} parent=15 // pred_check_branch
          %379 = sbr.rel (%p377) target = $region28
        $region27: #{tpu_custom_call.1} parent=15 // pred_region
          %s380 = smul.u32 %s41, 3
          %s381 = sadd.s32 %s380, %s42
          %s382 = sld [smem:[#allocation3 + %s381]]
          %s383 = smul.u32 16, %s382
          %p384 = scmp.lt.s32.totalorder %s383, 47
          %s385 = scalar_select %p384, %s383, 47
          %s386 = smul.addr %s385, 8
          %s387 = scalar_lea.vmem %s5, %s386
          %s388 = smul.u32 %s41, 3
          %s389 = sadd.s32 %s388, %s42
          %s390 = sld [smem:[#allocation3 + %s389]]
          %s391 = smul.u32 16, %s390
        $region28: #{tpu_custom_call.1} parent=15 // pred_fallthru
          _
        // Predicated region
        $region29: #{tpu_custom_call.1} parent=15 // pred_check
          %p392 = pneg %p168
        $region30: #{tpu_custom_call.1} parent=15 // pred_check_branch
          %394 = sbr.rel (%p392) target = $region32
        $region31: #{tpu_custom_call.1} parent=15 // pred_region
          %s395 = smul.u32 %s41, 3
          %s396 = sadd.s32 %s395, %s42
          %s397 = sld [smem:[#allocation4 + %s396]]
          %s398 = smul.u32 16, %s397
          %p399 = scmp.lt.s32.totalorder %s398, 47
          %s400 = scalar_select %p399, %s398, 47
          %s401 = smul.addr %s400, 8
          %s402 = scalar_lea.vmem %s6, %s401
          %s403 = smul.u32 %s41, 3
          %s404 = sadd.s32 %s403, %s42
          %s405 = sld [smem:[#allocation4 + %s404]]
          %s406 = smul.u32 16, %s405
        $region32: #{tpu_custom_call.1} parent=15 // pred_fallthru
          _
        // Predicated region
        $region33: #{tpu_custom_call.1} parent=15 // pred_check
          %p407 = pneg %p200
        $region34: #{tpu_custom_call.1} parent=15 // pred_check_branch
          %409 = sbr.rel (%p407) target = $region36
        $region35: #{tpu_custom_call.1} parent=15 // pred_region
          %s410 = smul.u32 %s41, 3
          %s411 = sadd.s32 %s410, %s42
          %s412 = sld [smem:[#allocation3 + %s411]]
          %p413 = scmp.lt.s32.totalorder %s412, 2
          %s414 = scalar_select %p413, %s412, 2
          %s415 = smul.addr %s414, 16
          %s416 = smul.addr %s415, 8
          %s417 = scalar_lea.vmem %s7, %s416
          %s418 = smul.u32 %s41, 3
          %s419 = sadd.s32 %s418, %s42
          %s420 = sld [smem:[#allocation3 + %s419]]
        $region36: #{tpu_custom_call.1} parent=15 // pred_fallthru
          _
        // Predicated region
        $region37: #{tpu_custom_call.1} parent=15 // pred_check
          %p421 = pneg %p232
        $region38: #{tpu_custom_call.1} parent=15 // pred_check_branch
          %423 = sbr.rel (%p421) target = $region40
        $region39: #{tpu_custom_call.1} parent=15 // pred_region
          %s424 = smul.u32 %s41, 3
          %s425 = sadd.s32 %s424, %s42
          %s426 = sld [smem:[#allocation3 + %s425]]
          %p427 = scmp.lt.s32.totalorder %s426, 2
          %s428 = scalar_select %p427, %s426, 2
          %s429 = smul.addr %s428, 16
          %s430 = smul.addr %s429, 8
          %s431 = scalar_lea.vmem %s8, %s430
          %s432 = smul.u32 %s41, 3
          %s433 = sadd.s32 %s432, %s42
          %s434 = sld [smem:[#allocation3 + %s433]]
        $region40: #{tpu_custom_call.1} parent=15 // pred_fallthru
          _
        // Predicated region
        $region41: #{tpu_custom_call.1} parent=15 // pred_check
          %p435 = pneg %p264
        $region42: #{tpu_custom_call.1} parent=15 // pred_check_branch
          %437 = sbr.rel (%p435) target = $region44
        $region43: #{tpu_custom_call.1} parent=15 // pred_region
          %s438 = smul.u32 %s41, 3
          %s439 = sadd.s32 %s438, %s42
          %s440 = sld [smem:[#allocation4 + %s439]]
          %p441 = scmp.lt.s32.totalorder %s440, 2
          %s442 = scalar_select %p441, %s440, 2
          %s443 = scalar_lea.vmem %s9, %s442
          %s444 = smul.u32 %s41, 3
          %s445 = sadd.s32 %s444, %s42
          %s446 = sld [smem:[#allocation4 + %s445]]
        $region44: #{tpu_custom_call.1} parent=15 // pred_fallthru
          _
        // Predicated region
        $region45: #{tpu_custom_call.1} parent=15 // pred_check
          %p447 = pneg %p296
        $region46: #{tpu_custom_call.1} parent=15 // pred_check_branch
          %449 = sbr.rel (%p447) target = $region48
        $region47: #{tpu_custom_call.1} parent=15 // pred_region
          %s450 = smul.u32 %s41, 3
          %s451 = sadd.s32 %s450, %s42
          %s452 = sld [smem:[#allocation4 + %s451]]
          %p453 = scmp.lt.s32.totalorder %s452, 2
          %s454 = scalar_select %p453, %s452, 2
          %s455 = scalar_lea.vmem %s10, %s454
          %s456 = smul.u32 %s41, 3
          %s457 = sadd.s32 %s456, %s42
          %s458 = sld [smem:[#allocation4 + %s457]]
        $region48: #{tpu_custom_call.1} parent=15 // pred_fallthru
          _
      $region16: #{tpu_custom_call.1} parent=5 // pred_fallthru
        _
      %p459 = scmp.le.s32.totalorder 1, %s34
      %p460 = scmp.lt.s32.totalorder %s34, 7
      %p461 = pnand %p459, %p460
      %p462 = pneg %p461
      // Predicated region
      $region49: #{tpu_custom_call.1} parent=5 // pred_check
        _
      $region50: #{tpu_custom_call.1} parent=5 // pred_check_branch
        %464 = sbr.rel (%p461) target = $region52
      $region51: #{tpu_custom_call.1} parent=5 // pred_region
        %s465 = ssub.s32 %s34, 1
        %s466 = smul.u32 %s43, 3
        %s467 = sadd.s32 %s466, %s44
        %s468 = sld [smem:[#allocation3 + %s467]]
        %s469 = smul.u32 16, %s468
        %p470 = scmp.lt.s32.totalorder %s469, 47
        %s471 = scalar_select %p470, %s469, 47
        %s472 = smul.addr %s471, 8
        %s473 = scalar_lea.vmem %s3, %s472
        %p474 = pneg %p78
        %p475 = pneg %p75
        %s476 = smul.u32 %s43, 3
        %s477 = sadd.s32 %s476, %s44
        %s478 = sld [smem:[#allocation4 + %s477]]
        %s479 = smul.u32 16, %s478
        %p480 = scmp.lt.s32.totalorder %s479, 47
        %s481 = scalar_select %p480, %s479, 47
        %s482 = smul.addr %s481, 8
        %s483 = scalar_lea.vmem %s4, %s482
        %p484 = pneg %p110
        %p485 = pneg %p107
        %s486 = smul.u32 %s43, 3
        %s487 = sadd.s32 %s486, %s44
        %s488 = sld [smem:[#allocation3 + %s487]]
        %s489 = smul.u32 16, %s488
        %p490 = scmp.lt.s32.totalorder %s489, 47
        %s491 = scalar_select %p490, %s489, 47
        %s492 = smul.addr %s491, 8
        %s493 = scalar_lea.vmem %s5, %s492
        %p494 = pneg %p142
        %p495 = pneg %p139
        %s496 = smul.u32 %s43, 3
        %s497 = sadd.s32 %s496, %s44
        %s498 = sld [smem:[#allocation4 + %s497]]
        %s499 = smul.u32 16, %s498
        %p500 = scmp.lt.s32.totalorder %s499, 47
        %s501 = scalar_select %p500, %s499, 47
        %s502 = smul.addr %s501, 8
        %s503 = scalar_lea.vmem %s6, %s502
        %p504 = pneg %p174
        %p505 = pneg %p171
        %s506 = smul.u32 %s43, 3
        %s507 = sadd.s32 %s506, %s44
        %s508 = sld [smem:[#allocation3 + %s507]]
        %p509 = scmp.lt.s32.totalorder %s508, 2
        %s510 = scalar_select %p509, %s508, 2
        %s511 = smul.addr %s510, 16
        %s512 = smul.addr %s511, 8
        %s513 = scalar_lea.vmem %s7, %s512
        %p514 = pneg %p206
        %p515 = pneg %p203
        %s516 = smul.u32 %s43, 3
        %s517 = sadd.s32 %s516, %s44
        %s518 = sld [smem:[#allocation3 + %s517]]
        %p519 = scmp.lt.s32.totalorder %s518, 2
        %s520 = scalar_select %p519, %s518, 2
        %s521 = smul.addr %s520, 16
        %s522 = smul.addr %s521, 8
        %s523 = scalar_lea.vmem %s8, %s522
        %p524 = pneg %p238
        %p525 = pneg %p235
        %s526 = smul.u32 %s43, 3
        %s527 = sadd.s32 %s526, %s44
        %s528 = sld [smem:[#allocation4 + %s527]]
        %p529 = scmp.lt.s32.totalorder %s528, 2
        %s530 = scalar_select %p529, %s528, 2
        %s531 = scalar_lea.vmem %s9, %s530
        %p532 = pneg %p270
        %p533 = pneg %p267
        %s534 = smul.u32 %s43, 3
        %s535 = sadd.s32 %s534, %s44
        %s536 = sld [smem:[#allocation4 + %s535]]
        %p537 = scmp.lt.s32.totalorder %s536, 2
        %s538 = scalar_select %p537, %s536, 2
        %s539 = scalar_lea.vmem %s10, %s538
        %p540 = pneg %p302
        %p541 = pneg %p299
        %p542 = pneg %p328
        %p543 = pneg %p325
        %s544 = sand.u32 %s315, 1
        %s545 = scalar_lea.sflag [#allocation7], %s544
        %s546 = sand.u32 %s315, 1
        %s547 = smul.addr %s546, 8
        %s548 = scalar_lea.vmem [#allocation6], %s547
        %s549 = smul.u32 %s43, 3
        %s550 = sadd.s32 %s549, %s44
        %s551 = sld [smem:[#allocation3 + %s550]]
        %s552 = smul.u32 16, %s551
        %p553 = scmp.lt.s32.totalorder %s552, 47
        %s554 = scalar_select %p553, %s552, 47
        %s555 = smul.addr %s554, 8
        %s556 = scalar_lea.vmem %s3, %s555
        %s557 = smul.u32 %s43, 3
        %s558 = sadd.s32 %s557, %s44
        %s559 = sld [smem:[#allocation3 + %s558]]
        %s560 = smul.u32 16, %s559
        %s561 = smul.u32 %s43, 3
        %s562 = sadd.s32 %s561, %s44
        %s563 = sld [smem:[#allocation4 + %s562]]
        %s564 = smul.u32 16, %s563
        %p565 = scmp.lt.s32.totalorder %s564, 47
        %s566 = scalar_select %p565, %s564, 47
        %s567 = smul.addr %s566, 8
        %s568 = scalar_lea.vmem %s4, %s567
        %s569 = smul.u32 %s43, 3
        %s570 = sadd.s32 %s569, %s44
        %s571 = sld [smem:[#allocation4 + %s570]]
        %s572 = smul.u32 16, %s571
        %s573 = smul.u32 %s43, 3
        %s574 = sadd.s32 %s573, %s44
        %s575 = sld [smem:[#allocation3 + %s574]]
        %s576 = smul.u32 16, %s575
        %p577 = scmp.lt.s32.totalorder %s576, 47
        %s578 = scalar_select %p577, %s576, 47
        %s579 = smul.addr %s578, 8
        %s580 = scalar_lea.vmem %s5, %s579
        %s581 = smul.u32 %s43, 3
        %s582 = sadd.s32 %s581, %s44
        %s583 = sld [smem:[#allocation3 + %s582]]
        %s584 = smul.u32 16, %s583
        %s585 = smul.u32 %s43, 3
        %s586 = sadd.s32 %s585, %s44
        %s587 = sld [smem:[#allocation4 + %s586]]
        %s588 = smul.u32 16, %s587
        %p589 = scmp.lt.s32.totalorder %s588, 47
        %s590 = scalar_select %p589, %s588, 47
        %s591 = smul.addr %s590, 8
        %s592 = scalar_lea.vmem %s6, %s591
        %s593 = smul.u32 %s43, 3
        %s594 = sadd.s32 %s593, %s44
        %s595 = sld [smem:[#allocation4 + %s594]]
        %s596 = smul.u32 16, %s595
        %s597 = smul.u32 %s43, 3
        %s598 = sadd.s32 %s597, %s44
        %s599 = sld [smem:[#allocation3 + %s598]]
        %p600 = scmp.lt.s32.totalorder %s599, 2
        %s601 = scalar_select %p600, %s599, 2
        %s602 = smul.addr %s601, 16
        %s603 = smul.addr %s602, 8
        %s604 = scalar_lea.vmem %s7, %s603
        %s605 = smul.u32 %s43, 3
        %s606 = sadd.s32 %s605, %s44
        %s607 = sld [smem:[#allocation3 + %s606]]
        %s608 = smul.u32 %s43, 3
        %s609 = sadd.s32 %s608, %s44
        %s610 = sld [smem:[#allocation3 + %s609]]
        %p611 = scmp.lt.s32.totalorder %s610, 2
        %s612 = scalar_select %p611, %s610, 2
        %s613 = smul.addr %s612, 16
        %s614 = smul.addr %s613, 8
        %s615 = scalar_lea.vmem %s8, %s614
        %s616 = smul.u32 %s43, 3
        %s617 = sadd.s32 %s616, %s44
        %s618 = sld [smem:[#allocation3 + %s617]]
        %s619 = smul.u32 %s43, 3
        %s620 = sadd.s32 %s619, %s44
        %s621 = sld [smem:[#allocation4 + %s620]]
        %p622 = scmp.lt.s32.totalorder %s621, 2
        %s623 = scalar_select %p622, %s621, 2
        %s624 = scalar_lea.vmem %s9, %s623
        %s625 = smul.u32 %s43, 3
        %s626 = sadd.s32 %s625, %s44
        %s627 = sld [smem:[#allocation4 + %s626]]
        %s628 = smul.u32 %s43, 3
        %s629 = sadd.s32 %s628, %s44
        %s630 = sld [smem:[#allocation4 + %s629]]
        %p631 = scmp.lt.s32.totalorder %s630, 2
        %s632 = scalar_select %p631, %s630, 2
        %s633 = scalar_lea.vmem %s10, %s632
        %s634 = smul.u32 %s43, 3
        %s635 = sadd.s32 %s634, %s44
        %s636 = sld [smem:[#allocation4 + %s635]]
        %s637 = smul.u32 %s43, 3
        %s638 = sadd.s32 %s637, %s44
        %s639 = sld [smem:[#allocation3 + %s638]]
        %s640 = sld [smem:[#allocation4 + %s638]]
        %s641 = sld [smem:[#allocation5 + %s638]]
        %p642 = scmp.eq.s32.totalorder %s641, 1
        %p643 = scmp.eq.s32.totalorder %s44, 0
        // Predicated region
        $region53: #{tpu_custom_call.1} parent=51 // pred_check
          %p644 = pneg %p643
        $region54: #{tpu_custom_call.1} parent=51 // pred_check_branch
          %646 = sbr.rel (%p644) target = $region56
        $region55: #{tpu_custom_call.1} parent=51 // pred_region
          %647 = vst [vmem:[%s548] sm:$0xff] 0.0
        $region56: #{tpu_custom_call.1} parent=51 // pred_fallthru
          _
        // Predicated region
        $region57: #{tpu_custom_call.1} parent=51 // pred_check
          %p648 = pneg %p642
        $region58: #{tpu_custom_call.1} parent=51 // pred_check_branch
          %650 = sbr.rel (%p648) target = $region60
        $region59: #{tpu_custom_call.1} parent=51 // pred_region
          %v651 = vld [vmem:[%s556] sm:$0xff]
          %v652 = vld [vmem:[%s556 + $0x8] sm:$0xff]
          %v653 = vld [vmem:[%s556 + $0x10] sm:$0xff]
          %v654 = vld [vmem:[%s556 + $0x18] sm:$0xff]
          %v655 = vld [vmem:[%s556 + $0x20] sm:$0xff]
          %v656 = vld [vmem:[%s556 + $0x28] sm:$0xff]
          %v657 = vld [vmem:[%s556 + $0x30] sm:$0xff]
          %v658 = vld [vmem:[%s556 + $0x38] sm:$0xff]
          %v659 = vld [vmem:[%s556 + $0x40] sm:$0xff]
          %v660 = vld [vmem:[%s556 + $0x48] sm:$0xff]
          %v661 = vld [vmem:[%s556 + $0x50] sm:$0xff]
          %v662 = vld [vmem:[%s556 + $0x58] sm:$0xff]
          %v663 = vld [vmem:[%s556 + $0x60] sm:$0xff]
          %v664 = vld [vmem:[%s556 + $0x68] sm:$0xff]
          %v665 = vld [vmem:[%s556 + $0x70] sm:$0xff]
          %v666 = vld [vmem:[%s556 + $0x78] sm:$0xff]
          %v667 = vmul.f32 %v651, 0.70710677
          %v668 = vmul.f32 %v652, 0.70710677
          %v669 = vmul.f32 %v653, 0.70710677
          %v670 = vmul.f32 %v654, 0.70710677
          %v671 = vmul.f32 %v655, 0.70710677
          %v672 = vmul.f32 %v656, 0.70710677
          %v673 = vmul.f32 %v657, 0.70710677
          %v674 = vmul.f32 %v658, 0.70710677
          %v675 = vmul.f32 %v659, 0.70710677
          %v676 = vmul.f32 %v660, 0.70710677
          %v677 = vmul.f32 %v661, 0.70710677
          %v678 = vmul.f32 %v662, 0.70710677
          %v679 = vmul.f32 %v663, 0.70710677
          %v680 = vmul.f32 %v664, 0.70710677
          %v681 = vmul.f32 %v665, 0.70710677
          %v682 = vmul.f32 %v666, 0.70710677
          %v683 = vld [vmem:[%s592] sm:$0xff]
          %v684 = vld [vmem:[%s592 + $0x8] sm:$0xff]
          %v685 = vld [vmem:[%s592 + $0x10] sm:$0xff]
          %v686 = vld [vmem:[%s592 + $0x18] sm:$0xff]
          %v687 = vld [vmem:[%s592 + $0x20] sm:$0xff]
          %v688 = vld [vmem:[%s592 + $0x28] sm:$0xff]
          %v689 = vld [vmem:[%s592 + $0x30] sm:$0xff]
          %v690 = vld [vmem:[%s592 + $0x38] sm:$0xff]
          %v691 = vld [vmem:[%s592 + $0x40] sm:$0xff]
          %v692 = vld [vmem:[%s592 + $0x48] sm:$0xff]
          %v693 = vld [vmem:[%s592 + $0x50] sm:$0xff]
          %v694 = vld [vmem:[%s592 + $0x58] sm:$0xff]
          %v695 = vld [vmem:[%s592 + $0x60] sm:$0xff]
          %v696 = vld [vmem:[%s592 + $0x68] sm:$0xff]
          %v697 = vld [vmem:[%s592 + $0x70] sm:$0xff]
          %v698 = vld [vmem:[%s592 + $0x78] sm:$0xff]
          %v699 = vmul.f32 %v683, 0.70710677
          %v700 = vmul.f32 %v684, 0.70710677
          %v701 = vmul.f32 %v685, 0.70710677
          %v702 = vmul.f32 %v686, 0.70710677
          %v703 = vmul.f32 %v687, 0.70710677
          %v704 = vmul.f32 %v688, 0.70710677
          %v705 = vmul.f32 %v689, 0.70710677
          %v706 = vmul.f32 %v690, 0.70710677
          %v707 = vmul.f32 %v691, 0.70710677
          %v708 = vmul.f32 %v692, 0.70710677
          %v709 = vmul.f32 %v693, 0.70710677
          %v710 = vmul.f32 %v694, 0.70710677
          %v711 = vmul.f32 %v695, 0.70710677
          %v712 = vmul.f32 %v696, 0.70710677
          %v713 = vmul.f32 %v697, 0.70710677
          %v714 = vmul.f32 %v698, 0.70710677
          %v715 = vld [vmem:[%s604] sm:$0xff]
          %v716 = vld [vmem:[%s604 + $0x8] sm:$0xff]
          %v717 = vld [vmem:[%s604 + $0x10] sm:$0xff]
          %v718 = vld [vmem:[%s604 + $0x18] sm:$0xff]
          %v719 = vld [vmem:[%s604 + $0x20] sm:$0xff]
          %v720 = vld [vmem:[%s604 + $0x28] sm:$0xff]
          %v721 = vld [vmem:[%s604 + $0x30] sm:$0xff]
          %v722 = vld [vmem:[%s604 + $0x38] sm:$0xff]
          %v723 = vld [vmem:[%s604 + $0x40] sm:$0xff]
          %v724 = vld [vmem:[%s604 + $0x48] sm:$0xff]
          %v725 = vld [vmem:[%s604 + $0x50] sm:$0xff]
          %v726 = vld [vmem:[%s604 + $0x58] sm:$0xff]
          %v727 = vld [vmem:[%s604 + $0x60] sm:$0xff]
          %v728 = vld [vmem:[%s604 + $0x68] sm:$0xff]
          %v729 = vld [vmem:[%s604 + $0x70] sm:$0xff]
          %v730 = vld [vmem:[%s604 + $0x78] sm:$0xff]
          %v731 = vld [vmem:[%s615] sm:$0xff]
          %v732 = vld [vmem:[%s615 + $0x8] sm:$0xff]
          %v733 = vld [vmem:[%s615 + $0x10] sm:$0xff]
          %v734 = vld [vmem:[%s615 + $0x18] sm:$0xff]
          %v735 = vld [vmem:[%s615 + $0x20] sm:$0xff]
          %v736 = vld [vmem:[%s615 + $0x28] sm:$0xff]
          %v737 = vld [vmem:[%s615 + $0x30] sm:$0xff]
          %v738 = vld [vmem:[%s615 + $0x38] sm:$0xff]
          %v739 = vld [vmem:[%s615 + $0x40] sm:$0xff]
          %v740 = vld [vmem:[%s615 + $0x48] sm:$0xff]
          %v741 = vld [vmem:[%s615 + $0x50] sm:$0xff]
          %v742 = vld [vmem:[%s615 + $0x58] sm:$0xff]
          %v743 = vld [vmem:[%s615 + $0x60] sm:$0xff]
          %v744 = vld [vmem:[%s615 + $0x68] sm:$0xff]
          %v745 = vld [vmem:[%s615 + $0x70] sm:$0xff]
          %v746 = vld [vmem:[%s615 + $0x78] sm:$0xff]
          %v747 = vld [vmem:[%s624] sm:$0x1]
          %v748 = vld [vmem:[%s633] sm:$0x1]
          %vm749 = vcmask 785408
          %v751 = vsel %vm749, %v667, 0
          %v754 = vsel %vm749, %v668, 0
          %v757 = vsel %vm749, %v669, 0
          %v760 = vsel %vm749, %v670, 0
          %v763 = vsel %vm749, %v671, 0
          %v766 = vsel %vm749, %v672, 0
          %v769 = vsel %vm749, %v673, 0
          %v772 = vsel %vm749, %v674, 0
          %v775 = vsel %vm749, %v675, 0
          %v778 = vsel %vm749, %v676, 0
          %v781 = vsel %vm749, %v677, 0
          %v784 = vsel %vm749, %v678, 0
          %v787 = vsel %vm749, %v679, 0
          %v790 = vsel %vm749, %v680, 0
          %v793 = vsel %vm749, %v681, 0
          %v796 = vsel %vm749, %v682, 0
          %v799 = vsel %vm749, %v699, 0
          %v802 = vsel %vm749, %v700, 0
          %v805 = vsel %vm749, %v701, 0
          %v808 = vsel %vm749, %v702, 0
          %v811 = vsel %vm749, %v703, 0
          %v814 = vsel %vm749, %v704, 0
          %v817 = vsel %vm749, %v705, 0
          %v820 = vsel %vm749, %v706, 0
          %v823 = vsel %vm749, %v707, 0
          %v826 = vsel %vm749, %v708, 0
          %v829 = vsel %vm749, %v709, 0
          %v832 = vsel %vm749, %v710, 0
          %v835 = vsel %vm749, %v711, 0
          %v838 = vsel %vm749, %v712, 0
          %v841 = vsel %vm749, %v713, 0
          %v844 = vsel %vm749, %v714, 0
          %846 = vmatprep.subr.mxu0 0.0
          %847 = vmatpush1.xpose.msra.mxu0 %v844
          %848 = vmatprep.subr.mxu0 0.0
          %849 = vmatpush1.xpose.msra.mxu0 %v841
          %850 = vmatprep.subr.mxu0 0.0
          %851 = vmatpush1.xpose.msra.mxu0 %v838
          %852 = vmatprep.subr.mxu0 0.0
          %853 = vmatpush1.xpose.msra.mxu0 %v835
          %854 = vmatprep.subr.mxu0 0.0
          %855 = vmatpush1.xpose.msra.mxu0 %v832
          %856 = vmatprep.subr.mxu0 0.0
          %857 = vmatpush1.xpose.msra.mxu0 %v829
          %858 = vmatprep.subr.mxu0 0.0
          %859 = vmatpush1.xpose.msra.mxu0 %v826
          %860 = vmatprep.subr.mxu0 0.0
          %861 = vmatpush1.xpose.msra.mxu0 %v823
          %862 = vmatprep.subr.mxu0 0.0
          %863 = vmatpush1.xpose.msra.mxu0 %v820
          %864 = vmatprep.subr.mxu0 0.0
          %865 = vmatpush1.xpose.msra.mxu0 %v817
          %866 = vmatprep.subr.mxu0 0.0
          %867 = vmatpush1.xpose.msra.mxu0 %v814
          %868 = vmatprep.subr.mxu0 0.0
          %869 = vmatpush1.xpose.msra.mxu0 %v811
          %870 = vmatprep.subr.mxu0 0.0
          %871 = vmatpush1.xpose.msra.mxu0 %v808
          %872 = vmatprep.subr.mxu0 0.0
          %873 = vmatpush1.xpose.msra.mxu0 %v805
          %874 = vmatprep.subr.mxu0 0.0
          %875 = vmatpush1.xpose.msra.mxu0 %v802
          %876 = vmatprep.subr.mxu0 0.0
          %877 = vmatpush1.xpose.msra.mxu0 %v799
          %878 = vmatprep.subr.mxu0 0.0
          %879 = vmatpush2.xpose.msra.mxu0 0.0
          %880 = vmatprep.subr.mxu0 0.0
          %881 = vmatpush2.xpose.msra.mxu0 0.0
          %882 = vmatprep.subr.mxu0 0.0
          %883 = vmatpush2.xpose.msra.mxu0 0.0
          %884 = vmatprep.subr.mxu0 0.0
          %885 = vmatpush2.xpose.msra.mxu0 0.0
          %886 = vmatprep.subr.mxu0 0.0
          %887 = vmatpush2.xpose.msra.mxu0 0.0
          %888 = vmatprep.subr.mxu0 0.0
          %889 = vmatpush2.xpose.msra.mxu0 0.0
          %890 = vmatprep.subr.mxu0 0.0
          %891 = vmatpush2.xpose.msra.mxu0 0.0
          %892 = vmatprep.subr.mxu0 0.0
          %893 = vmatpush2.xpose.msra.mxu0 0.0
          %894 = vmatprep.subr.mxu0 0.0
          %895 = vmatpush2.xpose.msra.mxu0 0.0
          %896 = vmatprep.subr.mxu0 0.0
          %897 = vmatpush2.xpose.msra.mxu0 0.0
          %898 = vmatprep.subr.mxu0 0.0
          %899 = vmatpush2.xpose.msra.mxu0 0.0
          %900 = vmatprep.subr.mxu0 0.0
          %901 = vmatpush2.xpose.msra.mxu0 0.0
          %902 = vmatprep.subr.mxu0 0.0
          %903 = vmatpush2.xpose.msra.mxu0 0.0
          %904 = vmatprep.subr.mxu0 0.0
          %905 = vmatpush2.xpose.msra.mxu0 0.0
          %906 = vmatprep.subr.mxu0 0.0
          %907 = vmatpush2.xpose.msra.mxu0 0.0
          %908 = vmatprep.subr.mxu0 0.0
          %909 = vmatpush2.xpose.msra.mxu0 0.0
          %910 = vmatprep.mubr.f32.mxu0 0.0
          %911 = vmatmul.mubr.f32.gmra.mxu0 %v751
          %v912 = vpop.f32.mrf.mxu0
          %v913 = vadd.f32 0.0, %v912
          %v914 = vpop.f32.mrf.mxu0
          %915 = vmatprep.mubr.f32.mxu0 0.0
          %916 = vmatmul.mubr.f32.gmra.mxu0 %v754
          %v917 = vpop.f32.mrf.mxu0
          %v918 = vadd.f32 0.0, %v917
          %v919 = vpop.f32.mrf.mxu0
          %920 = vmatprep.mubr.f32.mxu0 0.0
          %921 = vmatmul.mubr.f32.gmra.mxu0 %v757
          %v922 = vpop.f32.mrf.mxu0
          %v923 = vadd.f32 0.0, %v922
          %v924 = vpop.f32.mrf.mxu0
          %925 = vmatprep.mubr.f32.mxu0 0.0
          %926 = vmatmul.mubr.f32.gmra.mxu0 %v760
          %v927 = vpop.f32.mrf.mxu0
          %v928 = vadd.f32 0.0, %v927
          %v929 = vpop.f32.mrf.mxu0
          %930 = vmatprep.mubr.f32.mxu0 0.0
          %931 = vmatmul.mubr.f32.gmra.mxu0 %v763
          %v932 = vpop.f32.mrf.mxu0
          %v933 = vadd.f32 0.0, %v932
          %v934 = vpop.f32.mrf.mxu0
          %935 = vmatprep.mubr.f32.mxu0 0.0
          %936 = vmatmul.mubr.f32.gmra.mxu0 %v766
          %v937 = vpop.f32.mrf.mxu0
          %v938 = vadd.f32 0.0, %v937
          %v939 = vpop.f32.mrf.mxu0
          %940 = vmatprep.mubr.f32.mxu0 0.0
          %941 = vmatmul.mubr.f32.gmra.mxu0 %v769
          %v942 = vpop.f32.mrf.mxu0
          %v943 = vadd.f32 0.0, %v942
          %v944 = vpop.f32.mrf.mxu0
          %945 = vmatprep.mubr.f32.mxu0 0.0
          %946 = vmatmul.mubr.f32.gmra.mxu0 %v772
          %v947 = vpop.f32.mrf.mxu0
          %v948 = vadd.f32 0.0, %v947
          %v949 = vpop.f32.mrf.mxu0
          %950 = vmatprep.mubr.f32.mxu0 0.0
          %951 = vmatmul.mubr.f32.gmra.mxu0 %v775
          %v952 = vpop.f32.mrf.mxu0
          %v953 = vadd.f32 0.0, %v952
          %v954 = vpop.f32.mrf.mxu0
          %955 = vmatprep.mubr.f32.mxu0 0.0
          %956 = vmatmul.mubr.f32.gmra.mxu0 %v778
          %v957 = vpop.f32.mrf.mxu0
          %v958 = vadd.f32 0.0, %v957
          %v959 = vpop.f32.mrf.mxu0
          %960 = vmatprep.mubr.f32.mxu0 0.0
          %961 = vmatmul.mubr.f32.gmra.mxu0 %v781
          %v962 = vpop.f32.mrf.mxu0
          %v963 = vadd.f32 0.0, %v962
          %v964 = vpop.f32.mrf.mxu0
          %965 = vmatprep.mubr.f32.mxu0 0.0
          %966 = vmatmul.mubr.f32.gmra.mxu0 %v784
          %v967 = vpop.f32.mrf.mxu0
          %v968 = vadd.f32 0.0, %v967
          %v969 = vpop.f32.mrf.mxu0
          %970 = vmatprep.mubr.f32.mxu0 0.0
          %971 = vmatmul.mubr.f32.gmra.mxu0 %v787
          %v972 = vpop.f32.mrf.mxu0
          %v973 = vadd.f32 0.0, %v972
          %v974 = vpop.f32.mrf.mxu0
          %975 = vmatprep.mubr.f32.mxu0 0.0
          %976 = vmatmul.mubr.f32.gmra.mxu0 %v790
          %v977 = vpop.f32.mrf.mxu0
          %v978 = vadd.f32 0.0, %v977
          %v979 = vpop.f32.mrf.mxu0
          %980 = vmatprep.mubr.f32.mxu0 0.0
          %981 = vmatmul.mubr.f32.gmra.mxu0 %v793
          %v982 = vpop.f32.mrf.mxu0
          %v983 = vadd.f32 0.0, %v982
          %v984 = vpop.f32.mrf.mxu0
          %985 = vmatprep.mubr.f32.mxu0 0.0
          %986 = vmatmul.mubr.f32.gmra.mxu0 %v796
          %v987 = vpop.f32.mrf.mxu0
          %v988 = vadd.f32 0.0, %v987
          %v989 = vpop.f32.mrf.mxu0
          %990 = vdwg.mxu0
          %992 = vset.pattern.permute.xlu0 0
          %993 = vperm.xlu0 %992, %v715
          %v994 = vpop.permute.xlu0 %993
          %997 = vset.pattern.permute.xlu0 0
          %998 = vperm.xlu0 %997, %v716
          %v999 = vpop.permute.xlu0 %998
          %1002 = vset.pattern.permute.xlu0 0
          %1003 = vperm.xlu0 %1002, %v717
          %v1004 = vpop.permute.xlu0 %1003
          %1007 = vset.pattern.permute.xlu0 0
          %1008 = vperm.xlu0 %1007, %v718
          %v1009 = vpop.permute.xlu0 %1008
          %1012 = vset.pattern.permute.xlu0 0
          %1013 = vperm.xlu0 %1012, %v719
          %v1014 = vpop.permute.xlu0 %1013
          %1017 = vset.pattern.permute.xlu0 0
          %1018 = vperm.xlu0 %1017, %v720
          %v1019 = vpop.permute.xlu0 %1018
          %1022 = vset.pattern.permute.xlu0 0
          %1023 = vperm.xlu0 %1022, %v721
          %v1024 = vpop.permute.xlu0 %1023
          %1027 = vset.pattern.permute.xlu0 0
          %1028 = vperm.xlu0 %1027, %v722
          %v1029 = vpop.permute.xlu0 %1028
          %1032 = vset.pattern.permute.xlu0 0
          %1033 = vperm.xlu0 %1032, %v723
          %v1034 = vpop.permute.xlu0 %1033
          %1037 = vset.pattern.permute.xlu0 0
          %1038 = vperm.xlu0 %1037, %v724
          %v1039 = vpop.permute.xlu0 %1038
          %1042 = vset.pattern.permute.xlu0 0
          %1043 = vperm.xlu0 %1042, %v725
          %v1044 = vpop.permute.xlu0 %1043
          %1047 = vset.pattern.permute.xlu0 0
          %1048 = vperm.xlu0 %1047, %v726
          %v1049 = vpop.permute.xlu0 %1048
          %1052 = vset.pattern.permute.xlu0 0
          %1053 = vperm.xlu0 %1052, %v727
          %v1054 = vpop.permute.xlu0 %1053
          %1057 = vset.pattern.permute.xlu0 0
          %1058 = vperm.xlu0 %1057, %v728
          %v1059 = vpop.permute.xlu0 %1058
          %1062 = vset.pattern.permute.xlu0 0
          %1063 = vperm.xlu0 %1062, %v729
          %v1064 = vpop.permute.xlu0 %1063
          %1067 = vset.pattern.permute.xlu0 0
          %1068 = vperm.xlu0 %1067, %v730
          %v1069 = vpop.permute.xlu0 %1068
          %v1071 = vsub.f32 %v913, %v994
          %v1072 = vsub.f32 %v918, %v999
          %v1073 = vsub.f32 %v923, %v1004
          %v1074 = vsub.f32 %v928, %v1009
          %v1075 = vsub.f32 %v933, %v1014
          %v1076 = vsub.f32 %v938, %v1019
          %v1077 = vsub.f32 %v943, %v1024
          %v1078 = vsub.f32 %v948, %v1029
          %v1079 = vsub.f32 %v953, %v1034
          %v1080 = vsub.f32 %v958, %v1039
          %v1081 = vsub.f32 %v963, %v1044
          %v1082 = vsub.f32 %v968, %v1049
          %v1083 = vsub.f32 %v973, %v1054
          %v1084 = vsub.f32 %v978, %v1059
          %v1085 = vsub.f32 %v983, %v1064
          %v1086 = vsub.f32 %v988, %v1069
          %v1088 = vlaneseq
          %v1089 = vshrl.u32 %v1088, 7
          %v1090 = vsub.s32 0, %v1089
          %v1091 = vrot.slane %v748, %v1090
          %v1093 = vsub.f32 %v1071, %v1091
          %v1094 = vsub.f32 %v1072, %v1091
          %v1095 = vsub.f32 %v1073, %v1091
          %v1096 = vsub.f32 %v1074, %v1091
          %v1097 = vsub.f32 %v1075, %v1091
          %v1098 = vsub.f32 %v1076, %v1091
          %v1099 = vsub.f32 %v1077, %v1091
          %v1100 = vsub.f32 %v1078, %v1091
          %v1101 = vsub.f32 %v1079, %v1091
          %v1102 = vsub.f32 %v1080, %v1091
          %v1103 = vsub.f32 %v1081, %v1091
          %v1104 = vsub.f32 %v1082, %v1091
          %v1105 = vsub.f32 %v1083, %v1091
          %v1106 = vsub.f32 %v1084, %v1091
          %v1107 = vsub.f32 %v1085, %v1091
          %v1108 = vsub.f32 %v1086, %v1091
          %v1109 = vmul.f32 %v1093, 1.442695
          %v1110 = vpow.pop %v1109
          %v1111 = vmul.f32 %v1094, 1.442695
          %v1112 = vpow.pop %v1111
          %v1113 = vmul.f32 %v1095, 1.442695
          %v1114 = vpow.pop %v1113
          %v1115 = vmul.f32 %v1096, 1.442695
          %v1116 = vpow.pop %v1115
          %v1117 = vmul.f32 %v1097, 1.442695
          %v1118 = vpow.pop %v1117
          %v1119 = vmul.f32 %v1098, 1.442695
          %v1120 = vpow.pop %v1119
          %v1121 = vmul.f32 %v1099, 1.442695
          %v1122 = vpow.pop %v1121
          %v1123 = vmul.f32 %v1100, 1.442695
          %v1124 = vpow.pop %v1123
          %v1125 = vmul.f32 %v1101, 1.442695
          %v1126 = vpow.pop %v1125
          %v1127 = vmul.f32 %v1102, 1.442695
          %v1128 = vpow.pop %v1127
          %v1129 = vmul.f32 %v1103, 1.442695
          %v1130 = vpow.pop %v1129
          %v1131 = vmul.f32 %v1104, 1.442695
          %v1132 = vpow.pop %v1131
          %v1133 = vmul.f32 %v1105, 1.442695
          %v1134 = vpow.pop %v1133
          %v1135 = vmul.f32 %v1106, 1.442695
          %v1136 = vpow.pop %v1135
          %v1137 = vmul.f32 %v1107, 1.442695
          %v1138 = vpow.pop %v1137
          %v1139 = vmul.f32 %v1108, 1.442695
          %v1140 = vpow.pop %v1139
          %p1141 = scmp.ne.s32.totalorder %s639, %s640
          // Predicated region
          $region61: #{tpu_custom_call.1} parent=59 // pred_check
            %p1142 = pneg %p1141
          $region62: #{tpu_custom_call.1} parent=59 // pred_check_branch
            %1144 = sbr.rel (%p1142) target = $region64
          $region63: #{tpu_custom_call.1} parent=59 // pred_region
            %v1145 = vld [vmem:[%s568] sm:$0xff]
            %v1146 = vld [vmem:[%s568 + $0x8] sm:$0xff]
            %v1147 = vld [vmem:[%s568 + $0x10] sm:$0xff]
            %v1148 = vld [vmem:[%s568 + $0x18] sm:$0xff]
            %v1149 = vld [vmem:[%s568 + $0x20] sm:$0xff]
            %v1150 = vld [vmem:[%s568 + $0x28] sm:$0xff]
            %v1151 = vld [vmem:[%s568 + $0x30] sm:$0xff]
            %v1152 = vld [vmem:[%s568 + $0x38] sm:$0xff]
            %v1153 = vld [vmem:[%s568 + $0x40] sm:$0xff]
            %v1154 = vld [vmem:[%s568 + $0x48] sm:$0xff]
            %v1155 = vld [vmem:[%s568 + $0x50] sm:$0xff]
            %v1156 = vld [vmem:[%s568 + $0x58] sm:$0xff]
            %v1157 = vld [vmem:[%s568 + $0x60] sm:$0xff]
            %v1158 = vld [vmem:[%s568 + $0x68] sm:$0xff]
            %v1159 = vld [vmem:[%s568 + $0x70] sm:$0xff]
            %v1160 = vld [vmem:[%s568 + $0x78] sm:$0xff]
            %v1161 = vmul.f32 %v1145, 0.70710677
            %v1162 = vmul.f32 %v1146, 0.70710677
            %v1163 = vmul.f32 %v1147, 0.70710677
            %v1164 = vmul.f32 %v1148, 0.70710677
            %v1165 = vmul.f32 %v1149, 0.70710677
            %v1166 = vmul.f32 %v1150, 0.70710677
            %v1167 = vmul.f32 %v1151, 0.70710677
            %v1168 = vmul.f32 %v1152, 0.70710677
            %v1169 = vmul.f32 %v1153, 0.70710677
            %v1170 = vmul.f32 %v1154, 0.70710677
            %v1171 = vmul.f32 %v1155, 0.70710677
            %v1172 = vmul.f32 %v1156, 0.70710677
            %v1173 = vmul.f32 %v1157, 0.70710677
            %v1174 = vmul.f32 %v1158, 0.70710677
            %v1175 = vmul.f32 %v1159, 0.70710677
            %v1176 = vmul.f32 %v1160, 0.70710677
            %v1177 = vld [vmem:[%s580] sm:$0xff]
            %v1178 = vld [vmem:[%s580 + $0x8] sm:$0xff]
            %v1179 = vld [vmem:[%s580 + $0x10] sm:$0xff]
            %v1180 = vld [vmem:[%s580 + $0x18] sm:$0xff]
            %v1181 = vld [vmem:[%s580 + $0x20] sm:$0xff]
            %v1182 = vld [vmem:[%s580 + $0x28] sm:$0xff]
            %v1183 = vld [vmem:[%s580 + $0x30] sm:$0xff]
            %v1184 = vld [vmem:[%s580 + $0x38] sm:$0xff]
            %v1185 = vld [vmem:[%s580 + $0x40] sm:$0xff]
            %v1186 = vld [vmem:[%s580 + $0x48] sm:$0xff]
            %v1187 = vld [vmem:[%s580 + $0x50] sm:$0xff]
            %v1188 = vld [vmem:[%s580 + $0x58] sm:$0xff]
            %v1189 = vld [vmem:[%s580 + $0x60] sm:$0xff]
            %v1190 = vld [vmem:[%s580 + $0x68] sm:$0xff]
            %v1191 = vld [vmem:[%s580 + $0x70] sm:$0xff]
            %v1192 = vld [vmem:[%s580 + $0x78] sm:$0xff]
            %v1193 = vmul.f32 %v1177, 0.70710677
            %v1194 = vmul.f32 %v1178, 0.70710677
            %v1195 = vmul.f32 %v1179, 0.70710677
            %v1196 = vmul.f32 %v1180, 0.70710677
            %v1197 = vmul.f32 %v1181, 0.70710677
            %v1198 = vmul.f32 %v1182, 0.70710677
            %v1199 = vmul.f32 %v1183, 0.70710677
            %v1200 = vmul.f32 %v1184, 0.70710677
            %v1201 = vmul.f32 %v1185, 0.70710677
            %v1202 = vmul.f32 %v1186, 0.70710677
            %v1203 = vmul.f32 %v1187, 0.70710677
            %v1204 = vmul.f32 %v1188, 0.70710677
            %v1205 = vmul.f32 %v1189, 0.70710677
            %v1206 = vmul.f32 %v1190, 0.70710677
            %v1207 = vmul.f32 %v1191, 0.70710677
            %v1208 = vmul.f32 %v1192, 0.70710677
            %v1210 = vsel %vm749, %v1161, 0
            %v1213 = vsel %vm749, %v1162, 0
            %v1216 = vsel %vm749, %v1163, 0
            %v1219 = vsel %vm749, %v1164, 0
            %v1222 = vsel %vm749, %v1165, 0
            %v1225 = vsel %vm749, %v1166, 0
            %v1228 = vsel %vm749, %v1167, 0
            %v1231 = vsel %vm749, %v1168, 0
            %v1234 = vsel %vm749, %v1169, 0
            %v1237 = vsel %vm749, %v1170, 0
            %v1240 = vsel %vm749, %v1171, 0
            %v1243 = vsel %vm749, %v1172, 0
            %v1246 = vsel %vm749, %v1173, 0
            %v1249 = vsel %vm749, %v1174, 0
            %v1252 = vsel %vm749, %v1175, 0
            %v1255 = vsel %vm749, %v1176, 0
            %1257 = vmatprep.subr.mxu0 0.0
            %1258 = vmatpush1.xpose.msra.mxu0 %v1255
            %1259 = vmatprep.subr.mxu0 0.0
            %1260 = vmatpush1.xpose.msra.mxu0 %v1252
            %1261 = vmatprep.subr.mxu0 0.0
            %1262 = vmatpush1.xpose.msra.mxu0 %v1249
            %1263 = vmatprep.subr.mxu0 0.0
            %1264 = vmatpush1.xpose.msra.mxu0 %v1246
            %1265 = vmatprep.subr.mxu0 0.0
            %1266 = vmatpush1.xpose.msra.mxu0 %v1243
            %1267 = vmatprep.subr.mxu0 0.0
            %1268 = vmatpush1.xpose.msra.mxu0 %v1240
            %1269 = vmatprep.subr.mxu0 0.0
            %1270 = vmatpush1.xpose.msra.mxu0 %v1237
            %1271 = vmatprep.subr.mxu0 0.0
            %1272 = vmatpush1.xpose.msra.mxu0 %v1234
            %1273 = vmatprep.subr.mxu0 0.0
            %1274 = vmatpush1.xpose.msra.mxu0 %v1231
            %1275 = vmatprep.subr.mxu0 0.0
            %1276 = vmatpush1.xpose.msra.mxu0 %v1228
            %1277 = vmatprep.subr.mxu0 0.0
            %1278 = vmatpush1.xpose.msra.mxu0 %v1225
            %1279 = vmatprep.subr.mxu0 0.0
            %1280 = vmatpush1.xpose.msra.mxu0 %v1222
            %1281 = vmatprep.subr.mxu0 0.0
            %1282 = vmatpush1.xpose.msra.mxu0 %v1219
            %1283 = vmatprep.subr.mxu0 0.0
            %1284 = vmatpush1.xpose.msra.mxu0 %v1216
            %1285 = vmatprep.subr.mxu0 0.0
            %1286 = vmatpush1.xpose.msra.mxu0 %v1213
            %1287 = vmatprep.subr.mxu0 0.0
            %1288 = vmatpush1.xpose.msra.mxu0 %v1210
            %1289 = vmatprep.subr.mxu0 0.0
            %1290 = vmatpush2.xpose.msra.mxu0 0.0
            %1291 = vmatprep.subr.mxu0 0.0
            %1292 = vmatpush2.xpose.msra.mxu0 0.0
            %1293 = vmatprep.subr.mxu0 0.0
            %1294 = vmatpush2.xpose.msra.mxu0 0.0
            %1295 = vmatprep.subr.mxu0 0.0
            %1296 = vmatpush2.xpose.msra.mxu0 0.0
            %1297 = vmatprep.subr.mxu0 0.0
            %1298 = vmatpush2.xpose.msra.mxu0 0.0
            %1299 = vmatprep.subr.mxu0 0.0
            %1300 = vmatpush2.xpose.msra.mxu0 0.0
            %1301 = vmatprep.subr.mxu0 0.0
            %1302 = vmatpush2.xpose.msra.mxu0 0.0
            %1303 = vmatprep.subr.mxu0 0.0
            %1304 = vmatpush2.xpose.msra.mxu0 0.0
            %1305 = vmatprep.subr.mxu0 0.0
            %1306 = vmatpush2.xpose.msra.mxu0 0.0
            %1307 = vmatprep.subr.mxu0 0.0
            %1308 = vmatpush2.xpose.msra.mxu0 0.0
            %1309 = vmatprep.subr.mxu0 0.0
            %1310 = vmatpush2.xpose.msra.mxu0 0.0
            %1311 = vmatprep.subr.mxu0 0.0
            %1312 = vmatpush2.xpose.msra.mxu0 0.0
            %1313 = vmatprep.subr.mxu0 0.0
            %1314 = vmatpush2.xpose.msra.mxu0 0.0
            %1315 = vmatprep.subr.mxu0 0.0
            %1316 = vmatpush2.xpose.msra.mxu0 0.0
            %1317 = vmatprep.subr.mxu0 0.0
            %1318 = vmatpush2.xpose.msra.mxu0 0.0
            %1319 = vmatprep.subr.mxu0 0.0
            %1320 = vmatpush2.xpose.msra.mxu0 0.0
            %1321 = vmatprep.mubr.f32.mxu0 0.0
            %1322 = vmatmul.mubr.f32.gmra.mxu0 %v751
            %v1323 = vpop.f32.mrf.mxu0
            %v1324 = vadd.f32 0.0, %v1323
            %v1325 = vpop.f32.mrf.mxu0
            %1326 = vmatprep.mubr.f32.mxu0 0.0
            %1327 = vmatmul.mubr.f32.gmra.mxu0 %v754
            %v1328 = vpop.f32.mrf.mxu0
            %v1329 = vadd.f32 0.0, %v1328
            %v1330 = vpop.f32.mrf.mxu0
            %1331 = vmatprep.mubr.f32.mxu0 0.0
            %1332 = vmatmul.mubr.f32.gmra.mxu0 %v757
            %v1333 = vpop.f32.mrf.mxu0
            %v1334 = vadd.f32 0.0, %v1333
            %v1335 = vpop.f32.mrf.mxu0
            %1336 = vmatprep.mubr.f32.mxu0 0.0
            %1337 = vmatmul.mubr.f32.gmra.mxu0 %v760
            %v1338 = vpop.f32.mrf.mxu0
            %v1339 = vadd.f32 0.0, %v1338
            %v1340 = vpop.f32.mrf.mxu0
            %1341 = vmatprep.mubr.f32.mxu0 0.0
            %1342 = vmatmul.mubr.f32.gmra.mxu0 %v763
            %v1343 = vpop.f32.mrf.mxu0
            %v1344 = vadd.f32 0.0, %v1343
            %v1345 = vpop.f32.mrf.mxu0
            %1346 = vmatprep.mubr.f32.mxu0 0.0
            %1347 = vmatmul.mubr.f32.gmra.mxu0 %v766
            %v1348 = vpop.f32.mrf.mxu0
            %v1349 = vadd.f32 0.0, %v1348
            %v1350 = vpop.f32.mrf.mxu0
            %1351 = vmatprep.mubr.f32.mxu0 0.0
            %1352 = vmatmul.mubr.f32.gmra.mxu0 %v769
            %v1353 = vpop.f32.mrf.mxu0
            %v1354 = vadd.f32 0.0, %v1353
            %v1355 = vpop.f32.mrf.mxu0
            %1356 = vmatprep.mubr.f32.mxu0 0.0
            %1357 = vmatmul.mubr.f32.gmra.mxu0 %v772
            %v1358 = vpop.f32.mrf.mxu0
            %v1359 = vadd.f32 0.0, %v1358
            %v1360 = vpop.f32.mrf.mxu0
            %1361 = vmatprep.mubr.f32.mxu0 0.0
            %1362 = vmatmul.mubr.f32.gmra.mxu0 %v775
            %v1363 = vpop.f32.mrf.mxu0
            %v1364 = vadd.f32 0.0, %v1363
            %v1365 = vpop.f32.mrf.mxu0
            %1366 = vmatprep.mubr.f32.mxu0 0.0
            %1367 = vmatmul.mubr.f32.gmra.mxu0 %v778
            %v1368 = vpop.f32.mrf.mxu0
            %v1369 = vadd.f32 0.0, %v1368
            %v1370 = vpop.f32.mrf.mxu0
            %1371 = vmatprep.mubr.f32.mxu0 0.0
            %1372 = vmatmul.mubr.f32.gmra.mxu0 %v781
            %v1373 = vpop.f32.mrf.mxu0
            %v1374 = vadd.f32 0.0, %v1373
            %v1375 = vpop.f32.mrf.mxu0
            %1376 = vmatprep.mubr.f32.mxu0 0.0
            %1377 = vmatmul.mubr.f32.gmra.mxu0 %v784
            %v1378 = vpop.f32.mrf.mxu0
            %v1379 = vadd.f32 0.0, %v1378
            %v1380 = vpop.f32.mrf.mxu0
            %1381 = vmatprep.mubr.f32.mxu0 0.0
            %1382 = vmatmul.mubr.f32.gmra.mxu0 %v787
            %v1383 = vpop.f32.mrf.mxu0
            %v1384 = vadd.f32 0.0, %v1383
            %v1385 = vpop.f32.mrf.mxu0
            %1386 = vmatprep.mubr.f32.mxu0 0.0
            %1387 = vmatmul.mubr.f32.gmra.mxu0 %v790
            %v1388 = vpop.f32.mrf.mxu0
            %v1389 = vadd.f32 0.0, %v1388
            %v1390 = vpop.f32.mrf.mxu0
            %1391 = vmatprep.mubr.f32.mxu0 0.0
            %1392 = vmatmul.mubr.f32.gmra.mxu0 %v793
            %v1393 = vpop.f32.mrf.mxu0
            %v1394 = vadd.f32 0.0, %v1393
            %v1395 = vpop.f32.mrf.mxu0
            %1396 = vmatprep.mubr.f32.mxu0 0.0
            %1397 = vmatmul.mubr.f32.gmra.mxu0 %v796
            %v1398 = vpop.f32.mrf.mxu0
            %v1399 = vadd.f32 0.0, %v1398
            %v1400 = vpop.f32.mrf.mxu0
            %1401 = vdwg.mxu0
            %v1402 = vsub.f32 %v1324, %v994
            %v1403 = vsub.f32 %v1329, %v999
            %v1404 = vsub.f32 %v1334, %v1004
            %v1405 = vsub.f32 %v1339, %v1009
            %v1406 = vsub.f32 %v1344, %v1014
            %v1407 = vsub.f32 %v1349, %v1019
            %v1408 = vsub.f32 %v1354, %v1024
            %v1409 = vsub.f32 %v1359, %v1029
            %v1410 = vsub.f32 %v1364, %v1034
            %v1411 = vsub.f32 %v1369, %v1039
            %v1412 = vsub.f32 %v1374, %v1044
            %v1413 = vsub.f32 %v1379, %v1049
            %v1414 = vsub.f32 %v1384, %v1054
            %v1415 = vsub.f32 %v1389, %v1059
            %v1416 = vsub.f32 %v1394, %v1064
            %v1417 = vsub.f32 %v1399, %v1069
            %v1419 = vlaneseq
            %v1420 = vshrl.u32 %v1419, 7
            %v1421 = vsub.s32 0, %v1420
            %v1422 = vrot.slane %v747, %v1421
            %v1424 = vsub.f32 %v1402, %v1422
            %v1425 = vsub.f32 %v1403, %v1422
            %v1426 = vsub.f32 %v1404, %v1422
            %v1427 = vsub.f32 %v1405, %v1422
            %v1428 = vsub.f32 %v1406, %v1422
            %v1429 = vsub.f32 %v1407, %v1422
            %v1430 = vsub.f32 %v1408, %v1422
            %v1431 = vsub.f32 %v1409, %v1422
            %v1432 = vsub.f32 %v1410, %v1422
            %v1433 = vsub.f32 %v1411, %v1422
            %v1434 = vsub.f32 %v1412, %v1422
            %v1435 = vsub.f32 %v1413, %v1422
            %v1436 = vsub.f32 %v1414, %v1422
            %v1437 = vsub.f32 %v1415, %v1422
            %v1438 = vsub.f32 %v1416, %v1422
            %v1439 = vsub.f32 %v1417, %v1422
            %v1440 = vmul.f32 %v1424, 1.442695
            %v1441 = vpow.pop %v1440
            %v1442 = vmul.f32 %v1425, 1.442695
            %v1443 = vpow.pop %v1442
            %v1444 = vmul.f32 %v1426, 1.442695
            %v1445 = vpow.pop %v1444
            %v1446 = vmul.f32 %v1427, 1.442695
            %v1447 = vpow.pop %v1446
            %v1448 = vmul.f32 %v1428, 1.442695
            %v1449 = vpow.pop %v1448
            %v1450 = vmul.f32 %v1429, 1.442695
            %v1451 = vpow.pop %v1450
            %v1452 = vmul.f32 %v1430, 1.442695
            %v1453 = vpow.pop %v1452
            %v1454 = vmul.f32 %v1431, 1.442695
            %v1455 = vpow.pop %v1454
            %v1456 = vmul.f32 %v1432, 1.442695
            %v1457 = vpow.pop %v1456
            %v1458 = vmul.f32 %v1433, 1.442695
            %v1459 = vpow.pop %v1458
            %v1460 = vmul.f32 %v1434, 1.442695
            %v1461 = vpow.pop %v1460
            %v1462 = vmul.f32 %v1435, 1.442695
            %v1463 = vpow.pop %v1462
            %v1464 = vmul.f32 %v1436, 1.442695
            %v1465 = vpow.pop %v1464
            %v1466 = vmul.f32 %v1437, 1.442695
            %v1467 = vpow.pop %v1466
            %v1468 = vmul.f32 %v1438, 1.442695
            %v1469 = vpow.pop %v1468
            %v1470 = vmul.f32 %v1439, 1.442695
            %v1471 = vpow.pop %v1470
            %v1473 = vsel %vm749, %v1193, 0
            %v1476 = vsel %vm749, %v1194, 0
            %v1479 = vsel %vm749, %v1195, 0
            %v1482 = vsel %vm749, %v1196, 0
            %v1485 = vsel %vm749, %v1197, 0
            %v1488 = vsel %vm749, %v1198, 0
            %v1491 = vsel %vm749, %v1199, 0
            %v1494 = vsel %vm749, %v1200, 0
            %v1497 = vsel %vm749, %v1201, 0
            %v1500 = vsel %vm749, %v1202, 0
            %v1503 = vsel %vm749, %v1203, 0
            %v1506 = vsel %vm749, %v1204, 0
            %v1509 = vsel %vm749, %v1205, 0
            %v1512 = vsel %vm749, %v1206, 0
            %v1515 = vsel %vm749, %v1207, 0
            %v1518 = vsel %vm749, %v1208, 0
            %1520 = vmatprep.subr.mxu0 0.0
            %1521 = vmatpush1.xpose.msra.mxu0 %v844
            %1522 = vmatprep.subr.mxu0 0.0
            %1523 = vmatpush1.xpose.msra.mxu0 %v841
            %1524 = vmatprep.subr.mxu0 0.0
            %1525 = vmatpush1.xpose.msra.mxu0 %v838
            %1526 = vmatprep.subr.mxu0 0.0
            %1527 = vmatpush1.xpose.msra.mxu0 %v835
            %1528 = vmatprep.subr.mxu0 0.0
            %1529 = vmatpush1.xpose.msra.mxu0 %v832
            %1530 = vmatprep.subr.mxu0 0.0
            %1531 = vmatpush1.xpose.msra.mxu0 %v829
            %1532 = vmatprep.subr.mxu0 0.0
            %1533 = vmatpush1.xpose.msra.mxu0 %v826
            %1534 = vmatprep.subr.mxu0 0.0
            %1535 = vmatpush1.xpose.msra.mxu0 %v823
            %1536 = vmatprep.subr.mxu0 0.0
            %1537 = vmatpush1.xpose.msra.mxu0 %v820
            %1538 = vmatprep.subr.mxu0 0.0
            %1539 = vmatpush1.xpose.msra.mxu0 %v817
            %1540 = vmatprep.subr.mxu0 0.0
            %1541 = vmatpush1.xpose.msra.mxu0 %v814
            %1542 = vmatprep.subr.mxu0 0.0
            %1543 = vmatpush1.xpose.msra.mxu0 %v811
            %1544 = vmatprep.subr.mxu0 0.0
            %1545 = vmatpush1.xpose.msra.mxu0 %v808
            %1546 = vmatprep.subr.mxu0 0.0
            %1547 = vmatpush1.xpose.msra.mxu0 %v805
            %1548 = vmatprep.subr.mxu0 0.0
            %1549 = vmatpush1.xpose.msra.mxu0 %v802
            %1550 = vmatprep.subr.mxu0 0.0
            %1551 = vmatpush1.xpose.msra.mxu0 %v799
            %1552 = vmatprep.subr.mxu0 0.0
            %1553 = vmatpush2.xpose.msra.mxu0 0.0
            %1554 = vmatprep.subr.mxu0 0.0
            %1555 = vmatpush2.xpose.msra.mxu0 0.0
            %1556 = vmatprep.subr.mxu0 0.0
            %1557 = vmatpush2.xpose.msra.mxu0 0.0
            %1558 = vmatprep.subr.mxu0 0.0
            %1559 = vmatpush2.xpose.msra.mxu0 0.0
            %1560 = vmatprep.subr.mxu0 0.0
            %1561 = vmatpush2.xpose.msra.mxu0 0.0
            %1562 = vmatprep.subr.mxu0 0.0
            %1563 = vmatpush2.xpose.msra.mxu0 0.0
            %1564 = vmatprep.subr.mxu0 0.0
            %1565 = vmatpush2.xpose.msra.mxu0 0.0
            %1566 = vmatprep.subr.mxu0 0.0
            %1567 = vmatpush2.xpose.msra.mxu0 0.0
            %1568 = vmatprep.subr.mxu0 0.0
            %1569 = vmatpush2.xpose.msra.mxu0 0.0
            %1570 = vmatprep.subr.mxu0 0.0
            %1571 = vmatpush2.xpose.msra.mxu0 0.0
            %1572 = vmatprep.subr.mxu0 0.0
            %1573 = vmatpush2.xpose.msra.mxu0 0.0
            %1574 = vmatprep.subr.mxu0 0.0
            %1575 = vmatpush2.xpose.msra.mxu0 0.0
            %1576 = vmatprep.subr.mxu0 0.0
            %1577 = vmatpush2.xpose.msra.mxu0 0.0
            %1578 = vmatprep.subr.mxu0 0.0
            %1579 = vmatpush2.xpose.msra.mxu0 0.0
            %1580 = vmatprep.subr.mxu0 0.0
            %1581 = vmatpush2.xpose.msra.mxu0 0.0
            %1582 = vmatprep.subr.mxu0 0.0
            %1583 = vmatpush2.xpose.msra.mxu0 0.0
            %1584 = vmatprep.mubr.f32.mxu0 0.0
            %1585 = vmatmul.mubr.f32.gmra.mxu0 %v1473
            %v1586 = vpop.f32.mrf.mxu0
            %v1587 = vadd.f32 0.0, %v1586
            %v1588 = vpop.f32.mrf.mxu0
            %1589 = vmatprep.mubr.f32.mxu0 0.0
            %1590 = vmatmul.mubr.f32.gmra.mxu0 %v1476
            %v1591 = vpop.f32.mrf.mxu0
            %v1592 = vadd.f32 0.0, %v1591
            %v1593 = vpop.f32.mrf.mxu0
            %1594 = vmatprep.mubr.f32.mxu0 0.0
            %1595 = vmatmul.mubr.f32.gmra.mxu0 %v1479
            %v1596 = vpop.f32.mrf.mxu0
            %v1597 = vadd.f32 0.0, %v1596
            %v1598 = vpop.f32.mrf.mxu0
            %1599 = vmatprep.mubr.f32.mxu0 0.0
            %1600 = vmatmul.mubr.f32.gmra.mxu0 %v1482
            %v1601 = vpop.f32.mrf.mxu0
            %v1602 = vadd.f32 0.0, %v1601
            %v1603 = vpop.f32.mrf.mxu0
            %1604 = vmatprep.mubr.f32.mxu0 0.0
            %1605 = vmatmul.mubr.f32.gmra.mxu0 %v1485
            %v1606 = vpop.f32.mrf.mxu0
            %v1607 = vadd.f32 0.0, %v1606
            %v1608 = vpop.f32.mrf.mxu0
            %1609 = vmatprep.mubr.f32.mxu0 0.0
            %1610 = vmatmul.mubr.f32.gmra.mxu0 %v1488
            %v1611 = vpop.f32.mrf.mxu0
            %v1612 = vadd.f32 0.0, %v1611
            %v1613 = vpop.f32.mrf.mxu0
            %1614 = vmatprep.mubr.f32.mxu0 0.0
            %1615 = vmatmul.mubr.f32.gmra.mxu0 %v1491
            %v1616 = vpop.f32.mrf.mxu0
            %v1617 = vadd.f32 0.0, %v1616
            %v1618 = vpop.f32.mrf.mxu0
            %1619 = vmatprep.mubr.f32.mxu0 0.0
            %1620 = vmatmul.mubr.f32.gmra.mxu0 %v1494
            %v1621 = vpop.f32.mrf.mxu0
            %v1622 = vadd.f32 0.0, %v1621
            %v1623 = vpop.f32.mrf.mxu0
            %1624 = vmatprep.mubr.f32.mxu0 0.0
            %1625 = vmatmul.mubr.f32.gmra.mxu0 %v1497
            %v1626 = vpop.f32.mrf.mxu0
            %v1627 = vadd.f32 0.0, %v1626
            %v1628 = vpop.f32.mrf.mxu0
            %1629 = vmatprep.mubr.f32.mxu0 0.0
            %1630 = vmatmul.mubr.f32.gmra.mxu0 %v1500
            %v1631 = vpop.f32.mrf.mxu0
            %v1632 = vadd.f32 0.0, %v1631
            %v1633 = vpop.f32.mrf.mxu0
            %1634 = vmatprep.mubr.f32.mxu0 0.0
            %1635 = vmatmul.mubr.f32.gmra.mxu0 %v1503
            %v1636 = vpop.f32.mrf.mxu0
            %v1637 = vadd.f32 0.0, %v1636
            %v1638 = vpop.f32.mrf.mxu0
            %1639 = vmatprep.mubr.f32.mxu0 0.0
            %1640 = vmatmul.mubr.f32.gmra.mxu0 %v1506
            %v1641 = vpop.f32.mrf.mxu0
            %v1642 = vadd.f32 0.0, %v1641
            %v1643 = vpop.f32.mrf.mxu0
            %1644 = vmatprep.mubr.f32.mxu0 0.0
            %1645 = vmatmul.mubr.f32.gmra.mxu0 %v1509
            %v1646 = vpop.f32.mrf.mxu0
            %v1647 = vadd.f32 0.0, %v1646
            %v1648 = vpop.f32.mrf.mxu0
            %1649 = vmatprep.mubr.f32.mxu0 0.0
            %1650 = vmatmul.mubr.f32.gmra.mxu0 %v1512
            %v1651 = vpop.f32.mrf.mxu0
            %v1652 = vadd.f32 0.0, %v1651
            %v1653 = vpop.f32.mrf.mxu0
            %1654 = vmatprep.mubr.f32.mxu0 0.0
            %1655 = vmatmul.mubr.f32.gmra.mxu0 %v1515
            %v1656 = vpop.f32.mrf.mxu0
            %v1657 = vadd.f32 0.0, %v1656
            %v1658 = vpop.f32.mrf.mxu0
            %1659 = vmatprep.mubr.f32.mxu0 0.0
            %1660 = vmatmul.mubr.f32.gmra.mxu0 %v1518
            %v1661 = vpop.f32.mrf.mxu0
            %v1662 = vadd.f32 0.0, %v1661
            %v1663 = vpop.f32.mrf.mxu0
            %1664 = vdwg.mxu0
            %1666 = vset.pattern.permute.xlu0 0
            %1667 = vperm.xlu0 %1666, %v731
            %v1668 = vpop.permute.xlu0 %1667
            %1671 = vset.pattern.permute.xlu0 0
            %1672 = vperm.xlu0 %1671, %v732
            %v1673 = vpop.permute.xlu0 %1672
            %1676 = vset.pattern.permute.xlu0 0
            %1677 = vperm.xlu0 %1676, %v733
            %v1678 = vpop.permute.xlu0 %1677
            %1681 = vset.pattern.permute.xlu0 0
            %1682 = vperm.xlu0 %1681, %v734
            %v1683 = vpop.permute.xlu0 %1682
            %1686 = vset.pattern.permute.xlu0 0
            %1687 = vperm.xlu0 %1686, %v735
            %v1688 = vpop.permute.xlu0 %1687
            %1691 = vset.pattern.permute.xlu0 0
            %1692 = vperm.xlu0 %1691, %v736
            %v1693 = vpop.permute.xlu0 %1692
            %1696 = vset.pattern.permute.xlu0 0
            %1697 = vperm.xlu0 %1696, %v737
            %v1698 = vpop.permute.xlu0 %1697
            %1701 = vset.pattern.permute.xlu0 0
            %1702 = vperm.xlu0 %1701, %v738
            %v1703 = vpop.permute.xlu0 %1702
            %1706 = vset.pattern.permute.xlu0 0
            %1707 = vperm.xlu0 %1706, %v739
            %v1708 = vpop.permute.xlu0 %1707
            %1711 = vset.pattern.permute.xlu0 0
            %1712 = vperm.xlu0 %1711, %v740
            %v1713 = vpop.permute.xlu0 %1712
            %1716 = vset.pattern.permute.xlu0 0
            %1717 = vperm.xlu0 %1716, %v741
            %v1718 = vpop.permute.xlu0 %1717
            %1721 = vset.pattern.permute.xlu0 0
            %1722 = vperm.xlu0 %1721, %v742
            %v1723 = vpop.permute.xlu0 %1722
            %1726 = vset.pattern.permute.xlu0 0
            %1727 = vperm.xlu0 %1726, %v743
            %v1728 = vpop.permute.xlu0 %1727
            %1731 = vset.pattern.permute.xlu0 0
            %1732 = vperm.xlu0 %1731, %v744
            %v1733 = vpop.permute.xlu0 %1732
            %1736 = vset.pattern.permute.xlu0 0
            %1737 = vperm.xlu0 %1736, %v745
            %v1738 = vpop.permute.xlu0 %1737
            %1741 = vset.pattern.permute.xlu0 0
            %1742 = vperm.xlu0 %1741, %v746
            %v1743 = vpop.permute.xlu0 %1742
            %v1745 = vsub.f32 %v1587, %v1668
            %v1746 = vsub.f32 %v1592, %v1673
            %v1747 = vsub.f32 %v1597, %v1678
            %v1748 = vsub.f32 %v1602, %v1683
            %v1749 = vsub.f32 %v1607, %v1688
            %v1750 = vsub.f32 %v1612, %v1693
            %v1751 = vsub.f32 %v1617, %v1698
            %v1752 = vsub.f32 %v1622, %v1703
            %v1753 = vsub.f32 %v1627, %v1708
            %v1754 = vsub.f32 %v1632, %v1713
            %v1755 = vsub.f32 %v1637, %v1718
            %v1756 = vsub.f32 %v1642, %v1723
            %v1757 = vsub.f32 %v1647, %v1728
            %v1758 = vsub.f32 %v1652, %v1733
            %v1759 = vsub.f32 %v1657, %v1738
            %v1760 = vsub.f32 %v1662, %v1743
            %v1761 = vsub.f32 %v1745, %v1091
            %v1762 = vsub.f32 %v1746, %v1091
            %v1763 = vsub.f32 %v1747, %v1091
            %v1764 = vsub.f32 %v1748, %v1091
            %v1765 = vsub.f32 %v1749, %v1091
            %v1766 = vsub.f32 %v1750, %v1091
            %v1767 = vsub.f32 %v1751, %v1091
            %v1768 = vsub.f32 %v1752, %v1091
            %v1769 = vsub.f32 %v1753, %v1091
            %v1770 = vsub.f32 %v1754, %v1091
            %v1771 = vsub.f32 %v1755, %v1091
            %v1772 = vsub.f32 %v1756, %v1091
            %v1773 = vsub.f32 %v1757, %v1091
            %v1774 = vsub.f32 %v1758, %v1091
            %v1775 = vsub.f32 %v1759, %v1091
            %v1776 = vsub.f32 %v1760, %v1091
            %v1777 = vmul.f32 %v1761, 1.442695
            %v1778 = vpow.pop %v1777
            %v1779 = vmul.f32 %v1762, 1.442695
            %v1780 = vpow.pop %v1779
            %v1781 = vmul.f32 %v1763, 1.442695
            %v1782 = vpow.pop %v1781
            %v1783 = vmul.f32 %v1764, 1.442695
            %v1784 = vpow.pop %v1783
            %v1785 = vmul.f32 %v1765, 1.442695
            %v1786 = vpow.pop %v1785
            %v1787 = vmul.f32 %v1766, 1.442695
            %v1788 = vpow.pop %v1787
            %v1789 = vmul.f32 %v1767, 1.442695
            %v1790 = vpow.pop %v1789
            %v1791 = vmul.f32 %v1768, 1.442695
            %v1792 = vpow.pop %v1791
            %v1793 = vmul.f32 %v1769, 1.442695
            %v1794 = vpow.pop %v1793
            %v1795 = vmul.f32 %v1770, 1.442695
            %v1796 = vpow.pop %v1795
            %v1797 = vmul.f32 %v1771, 1.442695
            %v1798 = vpow.pop %v1797
            %v1799 = vmul.f32 %v1772, 1.442695
            %v1800 = vpow.pop %v1799
            %v1801 = vmul.f32 %v1773, 1.442695
            %v1802 = vpow.pop %v1801
            %v1803 = vmul.f32 %v1774, 1.442695
            %v1804 = vpow.pop %v1803
            %v1805 = vmul.f32 %v1775, 1.442695
            %v1806 = vpow.pop %v1805
            %v1807 = vmul.f32 %v1776, 1.442695
            %v1808 = vpow.pop %v1807
            %1809 = vmatprep.subr.mxu0 0.0
            %1810 = vmatpush1.xpose.msra.mxu0 %v1255
            %1811 = vmatprep.subr.mxu0 0.0
            %1812 = vmatpush1.xpose.msra.mxu0 %v1252
            %1813 = vmatprep.subr.mxu0 0.0
            %1814 = vmatpush1.xpose.msra.mxu0 %v1249
            %1815 = vmatprep.subr.mxu0 0.0
            %1816 = vmatpush1.xpose.msra.mxu0 %v1246
            %1817 = vmatprep.subr.mxu0 0.0
            %1818 = vmatpush1.xpose.msra.mxu0 %v1243
            %1819 = vmatprep.subr.mxu0 0.0
            %1820 = vmatpush1.xpose.msra.mxu0 %v1240
            %1821 = vmatprep.subr.mxu0 0.0
            %1822 = vmatpush1.xpose.msra.mxu0 %v1237
            %1823 = vmatprep.subr.mxu0 0.0
            %1824 = vmatpush1.xpose.msra.mxu0 %v1234
            %1825 = vmatprep.subr.mxu0 0.0
            %1826 = vmatpush1.xpose.msra.mxu0 %v1231
            %1827 = vmatprep.subr.mxu0 0.0
            %1828 = vmatpush1.xpose.msra.mxu0 %v1228
            %1829 = vmatprep.subr.mxu0 0.0
            %1830 = vmatpush1.xpose.msra.mxu0 %v1225
            %1831 = vmatprep.subr.mxu0 0.0
            %1832 = vmatpush1.xpose.msra.mxu0 %v1222
            %1833 = vmatprep.subr.mxu0 0.0
            %1834 = vmatpush1.xpose.msra.mxu0 %v1219
            %1835 = vmatprep.subr.mxu0 0.0
            %1836 = vmatpush1.xpose.msra.mxu0 %v1216
            %1837 = vmatprep.subr.mxu0 0.0
            %1838 = vmatpush1.xpose.msra.mxu0 %v1213
            %1839 = vmatprep.subr.mxu0 0.0
            %1840 = vmatpush1.xpose.msra.mxu0 %v1210
            %1841 = vmatprep.subr.mxu0 0.0
            %1842 = vmatpush2.xpose.msra.mxu0 0.0
            %1843 = vmatprep.subr.mxu0 0.0
            %1844 = vmatpush2.xpose.msra.mxu0 0.0
            %1845 = vmatprep.subr.mxu0 0.0
            %1846 = vmatpush2.xpose.msra.mxu0 0.0
            %1847 = vmatprep.subr.mxu0 0.0
            %1848 = vmatpush2.xpose.msra.mxu0 0.0
            %1849 = vmatprep.subr.mxu0 0.0
            %1850 = vmatpush2.xpose.msra.mxu0 0.0
            %1851 = vmatprep.subr.mxu0 0.0
            %1852 = vmatpush2.xpose.msra.mxu0 0.0
            %1853 = vmatprep.subr.mxu0 0.0
            %1854 = vmatpush2.xpose.msra.mxu0 0.0
            %1855 = vmatprep.subr.mxu0 0.0
            %1856 = vmatpush2.xpose.msra.mxu0 0.0
            %1857 = vmatprep.subr.mxu0 0.0
            %1858 = vmatpush2.xpose.msra.mxu0 0.0
            %1859 = vmatprep.subr.mxu0 0.0
            %1860 = vmatpush2.xpose.msra.mxu0 0.0
            %1861 = vmatprep.subr.mxu0 0.0
            %1862 = vmatpush2.xpose.msra.mxu0 0.0
            %1863 = vmatprep.subr.mxu0 0.0
            %1864 = vmatpush2.xpose.msra.mxu0 0.0
            %1865 = vmatprep.subr.mxu0 0.0
            %1866 = vmatpush2.xpose.msra.mxu0 0.0
            %1867 = vmatprep.subr.mxu0 0.0
            %1868 = vmatpush2.xpose.msra.mxu0 0.0
            %1869 = vmatprep.subr.mxu0 0.0
            %1870 = vmatpush2.xpose.msra.mxu0 0.0
            %1871 = vmatprep.subr.mxu0 0.0
            %1872 = vmatpush2.xpose.msra.mxu0 0.0
            %1873 = vmatprep.mubr.f32.mxu0 0.0
            %1874 = vmatmul.mubr.f32.gmra.mxu0 %v1473
            %v1875 = vpop.f32.mrf.mxu0
            %v1876 = vadd.f32 0.0, %v1875
            %v1877 = vpop.f32.mrf.mxu0
            %1878 = vmatprep.mubr.f32.mxu0 0.0
            %1879 = vmatmul.mubr.f32.gmra.mxu0 %v1476
            %v1880 = vpop.f32.mrf.mxu0
            %v1881 = vadd.f32 0.0, %v1880
            %v1882 = vpop.f32.mrf.mxu0
            %1883 = vmatprep.mubr.f32.mxu0 0.0
            %1884 = vmatmul.mubr.f32.gmra.mxu0 %v1479
            %v1885 = vpop.f32.mrf.mxu0
            %v1886 = vadd.f32 0.0, %v1885
            %v1887 = vpop.f32.mrf.mxu0
            %1888 = vmatprep.mubr.f32.mxu0 0.0
            %1889 = vmatmul.mubr.f32.gmra.mxu0 %v1482
            %v1890 = vpop.f32.mrf.mxu0
            %v1891 = vadd.f32 0.0, %v1890
            %v1892 = vpop.f32.mrf.mxu0
            %1893 = vmatprep.mubr.f32.mxu0 0.0
            %1894 = vmatmul.mubr.f32.gmra.mxu0 %v1485
            %v1895 = vpop.f32.mrf.mxu0
            %v1896 = vadd.f32 0.0, %v1895
            %v1897 = vpop.f32.mrf.mxu0
            %1898 = vmatprep.mubr.f32.mxu0 0.0
            %1899 = vmatmul.mubr.f32.gmra.mxu0 %v1488
            %v1900 = vpop.f32.mrf.mxu0
            %v1901 = vadd.f32 0.0, %v1900
            %v1902 = vpop.f32.mrf.mxu0
            %1903 = vmatprep.mubr.f32.mxu0 0.0
            %1904 = vmatmul.mubr.f32.gmra.mxu0 %v1491
            %v1905 = vpop.f32.mrf.mxu0
            %v1906 = vadd.f32 0.0, %v1905
            %v1907 = vpop.f32.mrf.mxu0
            %1908 = vmatprep.mubr.f32.mxu0 0.0
            %1909 = vmatmul.mubr.f32.gmra.mxu0 %v1494
            %v1910 = vpop.f32.mrf.mxu0
            %v1911 = vadd.f32 0.0, %v1910
            %v1912 = vpop.f32.mrf.mxu0
            %1913 = vmatprep.mubr.f32.mxu0 0.0
            %1914 = vmatmul.mubr.f32.gmra.mxu0 %v1497
            %v1915 = vpop.f32.mrf.mxu0
            %v1916 = vadd.f32 0.0, %v1915
            %v1917 = vpop.f32.mrf.mxu0
            %1918 = vmatprep.mubr.f32.mxu0 0.0
            %1919 = vmatmul.mubr.f32.gmra.mxu0 %v1500
            %v1920 = vpop.f32.mrf.mxu0
            %v1921 = vadd.f32 0.0, %v1920
            %v1922 = vpop.f32.mrf.mxu0
            %1923 = vmatprep.mubr.f32.mxu0 0.0
            %1924 = vmatmul.mubr.f32.gmra.mxu0 %v1503
            %v1925 = vpop.f32.mrf.mxu0
            %v1926 = vadd.f32 0.0, %v1925
            %v1927 = vpop.f32.mrf.mxu0
            %1928 = vmatprep.mubr.f32.mxu0 0.0
            %1929 = vmatmul.mubr.f32.gmra.mxu0 %v1506
            %v1930 = vpop.f32.mrf.mxu0
            %v1931 = vadd.f32 0.0, %v1930
            %v1932 = vpop.f32.mrf.mxu0
            %1933 = vmatprep.mubr.f32.mxu0 0.0
            %1934 = vmatmul.mubr.f32.gmra.mxu0 %v1509
            %v1935 = vpop.f32.mrf.mxu0
            %v1936 = vadd.f32 0.0, %v1935
            %v1937 = vpop.f32.mrf.mxu0
            %1938 = vmatprep.mubr.f32.mxu0 0.0
            %1939 = vmatmul.mubr.f32.gmra.mxu0 %v1512
            %v1940 = vpop.f32.mrf.mxu0
            %v1941 = vadd.f32 0.0, %v1940
            %v1942 = vpop.f32.mrf.mxu0
            %1943 = vmatprep.mubr.f32.mxu0 0.0
            %1944 = vmatmul.mubr.f32.gmra.mxu0 %v1515
            %v1945 = vpop.f32.mrf.mxu0
            %v1946 = vadd.f32 0.0, %v1945
            %v1947 = vpop.f32.mrf.mxu0
            %1948 = vmatprep.mubr.f32.mxu0 0.0
            %1949 = vmatmul.mubr.f32.gmra.mxu0 %v1518
            %v1950 = vpop.f32.mrf.mxu0
            %v1951 = vadd.f32 0.0, %v1950
            %v1952 = vpop.f32.mrf.mxu0
            %1953 = vdwg.mxu0
            %v1954 = vsub.f32 %v1876, %v1668
            %v1955 = vsub.f32 %v1881, %v1673
            %v1956 = vsub.f32 %v1886, %v1678
            %v1957 = vsub.f32 %v1891, %v1683
            %v1958 = vsub.f32 %v1896, %v1688
            %v1959 = vsub.f32 %v1901, %v1693
            %v1960 = vsub.f32 %v1906, %v1698
            %v1961 = vsub.f32 %v1911, %v1703
            %v1962 = vsub.f32 %v1916, %v1708
            %v1963 = vsub.f32 %v1921, %v1713
            %v1964 = vsub.f32 %v1926, %v1718
            %v1965 = vsub.f32 %v1931, %v1723
            %v1966 = vsub.f32 %v1936, %v1728
            %v1967 = vsub.f32 %v1941, %v1733
            %v1968 = vsub.f32 %v1946, %v1738
            %v1969 = vsub.f32 %v1951, %v1743
            %v1970 = vsub.f32 %v1954, %v1422
            %v1971 = vsub.f32 %v1955, %v1422
            %v1972 = vsub.f32 %v1956, %v1422
            %v1973 = vsub.f32 %v1957, %v1422
            %v1974 = vsub.f32 %v1958, %v1422
            %v1975 = vsub.f32 %v1959, %v1422
            %v1976 = vsub.f32 %v1960, %v1422
            %v1977 = vsub.f32 %v1961, %v1422
            %v1978 = vsub.f32 %v1962, %v1422
            %v1979 = vsub.f32 %v1963, %v1422
            %v1980 = vsub.f32 %v1964, %v1422
            %v1981 = vsub.f32 %v1965, %v1422
            %v1982 = vsub.f32 %v1966, %v1422
            %v1983 = vsub.f32 %v1967, %v1422
            %v1984 = vsub.f32 %v1968, %v1422
            %v1985 = vsub.f32 %v1969, %v1422
            %v1986 = vmul.f32 %v1970, 1.442695
            %v1987 = vpow.pop %v1986
            %v1988 = vmul.f32 %v1971, 1.442695
            %v1989 = vpow.pop %v1988
            %v1990 = vmul.f32 %v1972, 1.442695
            %v1991 = vpow.pop %v1990
            %v1992 = vmul.f32 %v1973, 1.442695
            %v1993 = vpow.pop %v1992
            %v1994 = vmul.f32 %v1974, 1.442695
            %v1995 = vpow.pop %v1994
            %v1996 = vmul.f32 %v1975, 1.442695
            %v1997 = vpow.pop %v1996
            %v1998 = vmul.f32 %v1976, 1.442695
            %v1999 = vpow.pop %v1998
            %v2000 = vmul.f32 %v1977, 1.442695
            %v2001 = vpow.pop %v2000
            %v2002 = vmul.f32 %v1978, 1.442695
            %v2003 = vpow.pop %v2002
            %v2004 = vmul.f32 %v1979, 1.442695
            %v2005 = vpow.pop %v2004
            %v2006 = vmul.f32 %v1980, 1.442695
            %v2007 = vpow.pop %v2006
            %v2008 = vmul.f32 %v1981, 1.442695
            %v2009 = vpow.pop %v2008
            %v2010 = vmul.f32 %v1982, 1.442695
            %v2011 = vpow.pop %v2010
            %v2012 = vmul.f32 %v1983, 1.442695
            %v2013 = vpow.pop %v2012
            %v2014 = vmul.f32 %v1984, 1.442695
            %v2015 = vpow.pop %v2014
            %v2016 = vmul.f32 %v1985, 1.442695
            %v2017 = vpow.pop %v2016
            %v2018 = vadd.f32 %v1441, %v1778
            %v2019 = vadd.f32 %v1443, %v1780
            %v2020 = vadd.f32 %v1445, %v1782
            %v2021 = vadd.f32 %v1447, %v1784
            %v2022 = vadd.f32 %v1449, %v1786
            %v2023 = vadd.f32 %v1451, %v1788
            %v2024 = vadd.f32 %v1453, %v1790
            %v2025 = vadd.f32 %v1455, %v1792
            %v2026 = vadd.f32 %v1457, %v1794
            %v2027 = vadd.f32 %v1459, %v1796
            %v2028 = vadd.f32 %v1461, %v1798
            %v2029 = vadd.f32 %v1463, %v1800
            %v2030 = vadd.f32 %v1465, %v1802
            %v2031 = vadd.f32 %v1467, %v1804
            %v2032 = vadd.f32 %v1469, %v1806
            %v2033 = vadd.f32 %v1471, %v1808
            %v2034 = vsub.f32 %v2018, %v1110
            %v2035 = vsub.f32 %v2019, %v1112
            %v2036 = vsub.f32 %v2020, %v1114
            %v2037 = vsub.f32 %v2021, %v1116
            %v2038 = vsub.f32 %v2022, %v1118
            %v2039 = vsub.f32 %v2023, %v1120
            %v2040 = vsub.f32 %v2024, %v1122
            %v2041 = vsub.f32 %v2025, %v1124
            %v2042 = vsub.f32 %v2026, %v1126
            %v2043 = vsub.f32 %v2027, %v1128
            %v2044 = vsub.f32 %v2028, %v1130
            %v2045 = vsub.f32 %v2029, %v1132
            %v2046 = vsub.f32 %v2030, %v1134
            %v2047 = vsub.f32 %v2031, %v1136
            %v2048 = vsub.f32 %v2032, %v1138
            %v2049 = vsub.f32 %v2033, %v1140
            %v2050 = vsub.f32 %v2034, %v1987
            %v2051 = vsub.f32 %v2035, %v1989
            %v2052 = vsub.f32 %v2036, %v1991
            %v2053 = vsub.f32 %v2037, %v1993
            %v2054 = vsub.f32 %v2038, %v1995
            %v2055 = vsub.f32 %v2039, %v1997
            %v2056 = vsub.f32 %v2040, %v1999
            %v2057 = vsub.f32 %v2041, %v2001
            %v2058 = vsub.f32 %v2042, %v2003
            %v2059 = vsub.f32 %v2043, %v2005
            %v2060 = vsub.f32 %v2044, %v2007
            %v2061 = vsub.f32 %v2045, %v2009
            %v2062 = vsub.f32 %v2046, %v2011
            %v2063 = vsub.f32 %v2047, %v2013
            %v2064 = vsub.f32 %v2048, %v2015
            %v2065 = vsub.f32 %v2049, %v2017
            %v2066 = vadd.f32 %v2050, %v2051
            %v2067 = vadd.f32 %v2066, %v2052
            %v2068 = vadd.f32 %v2067, %v2053
            %v2069 = vadd.f32 %v2068, %v2054
            %v2070 = vadd.f32 %v2069, %v2055
            %v2071 = vadd.f32 %v2070, %v2056
            %v2072 = vadd.f32 %v2071, %v2057
            %v2073 = vadd.f32 %v2072, %v2058
            %v2074 = vadd.f32 %v2073, %v2059
            %v2075 = vadd.f32 %v2074, %v2060
            %v2076 = vadd.f32 %v2075, %v2061
            %v2077 = vadd.f32 %v2076, %v2062
            %v2078 = vadd.f32 %v2077, %v2063
            %v2079 = vadd.f32 %v2078, %v2064
            %v2080 = vadd.f32 %v2079, %v2065
            %v2081 = vld [vmem:[%s548] sm:$0xff]
            %v2082 = vmul.f32 %v2080, 2.0
            %v2083 = vadd.f32 %v2081, %v2082
            %2084 = vst [vmem:[%s548] sm:$0xff] %v2083
          $region64: #{tpu_custom_call.1} parent=59 // pred_fallthru
            _
          %p2085 = scmp.eq.s32.totalorder %s639, %s640
          // Predicated region
          $region65: #{tpu_custom_call.1} parent=59 // pred_check
            %p2086 = pneg %p2085
          $region66: #{tpu_custom_call.1} parent=59 // pred_check_branch
            %2088 = sbr.rel (%p2086) target = $region68
          $region67: #{tpu_custom_call.1} parent=59 // pred_region
            %2089 = vmatprep.subr.mxu0 0.0
            %2090 = vmatpush1.xpose.msra.mxu0 %v796
            %2091 = vmatprep.subr.mxu0 0.0
            %2092 = vmatpush1.xpose.msra.mxu0 %v793
            %2093 = vmatprep.subr.mxu0 0.0
            %2094 = vmatpush1.xpose.msra.mxu0 %v790
            %2095 = vmatprep.subr.mxu0 0.0
            %2096 = vmatpush1.xpose.msra.mxu0 %v787
            %2097 = vmatprep.subr.mxu0 0.0
            %2098 = vmatpush1.xpose.msra.mxu0 %v784
            %2099 = vmatprep.subr.mxu0 0.0
            %2100 = vmatpush1.xpose.msra.mxu0 %v781
            %2101 = vmatprep.subr.mxu0 0.0
            %2102 = vmatpush1.xpose.msra.mxu0 %v778
            %2103 = vmatprep.subr.mxu0 0.0
            %2104 = vmatpush1.xpose.msra.mxu0 %v775
            %2105 = vmatprep.subr.mxu0 0.0
            %2106 = vmatpush1.xpose.msra.mxu0 %v772
            %2107 = vmatprep.subr.mxu0 0.0
            %2108 = vmatpush1.xpose.msra.mxu0 %v769
            %2109 = vmatprep.subr.mxu0 0.0
            %2110 = vmatpush1.xpose.msra.mxu0 %v766
            %2111 = vmatprep.subr.mxu0 0.0
            %2112 = vmatpush1.xpose.msra.mxu0 %v763
            %2113 = vmatprep.subr.mxu0 0.0
            %2114 = vmatpush1.xpose.msra.mxu0 %v760
            %2115 = vmatprep.subr.mxu0 0.0
            %2116 = vmatpush1.xpose.msra.mxu0 %v757
            %2117 = vmatprep.subr.mxu0 0.0
            %2118 = vmatpush1.xpose.msra.mxu0 %v754
            %2119 = vmatprep.subr.mxu0 0.0
            %2120 = vmatpush1.xpose.msra.mxu0 %v751
            %2121 = vmatprep.subr.mxu0 0.0
            %2122 = vmatpush2.xpose.msra.mxu0 0.0
            %2123 = vmatprep.subr.mxu0 0.0
            %2124 = vmatpush2.xpose.msra.mxu0 0.0
            %2125 = vmatprep.subr.mxu0 0.0
            %2126 = vmatpush2.xpose.msra.mxu0 0.0
            %2127 = vmatprep.subr.mxu0 0.0
            %2128 = vmatpush2.xpose.msra.mxu0 0.0
            %2129 = vmatprep.subr.mxu0 0.0
            %2130 = vmatpush2.xpose.msra.mxu0 0.0
            %2131 = vmatprep.subr.mxu0 0.0
            %2132 = vmatpush2.xpose.msra.mxu0 0.0
            %2133 = vmatprep.subr.mxu0 0.0
            %2134 = vmatpush2.xpose.msra.mxu0 0.0
            %2135 = vmatprep.subr.mxu0 0.0
            %2136 = vmatpush2.xpose.msra.mxu0 0.0
            %2137 = vmatprep.subr.mxu0 0.0
            %2138 = vmatpush2.xpose.msra.mxu0 0.0
            %2139 = vmatprep.subr.mxu0 0.0
            %2140 = vmatpush2.xpose.msra.mxu0 0.0
            %2141 = vmatprep.subr.mxu0 0.0
            %2142 = vmatpush2.xpose.msra.mxu0 0.0
            %2143 = vmatprep.subr.mxu0 0.0
            %2144 = vmatpush2.xpose.msra.mxu0 0.0
            %2145 = vmatprep.subr.mxu0 0.0
            %2146 = vmatpush2.xpose.msra.mxu0 0.0
            %2147 = vmatprep.subr.mxu0 0.0
            %2148 = vmatpush2.xpose.msra.mxu0 0.0
            %2149 = vmatprep.subr.mxu0 0.0
            %2150 = vmatpush2.xpose.msra.mxu0 0.0
            %2151 = vmatprep.subr.mxu0 0.0
            %2152 = vmatpush2.xpose.msra.mxu0 0.0
            %2153 = vmatprep.mubr.f32.mxu0 0.0
            %2154 = vmatmul.mubr.f32.gmra.mxu0 %v751
            %v2155 = vpop.f32.mrf.mxu0
            %v2156 = vadd.f32 0.0, %v2155
            %v2157 = vpop.f32.mrf.mxu0
            %2158 = vmatprep.mubr.f32.mxu0 0.0
            %2159 = vmatmul.mubr.f32.gmra.mxu0 %v754
            %v2160 = vpop.f32.mrf.mxu0
            %v2161 = vadd.f32 0.0, %v2160
            %v2162 = vpop.f32.mrf.mxu0
            %2163 = vmatprep.mubr.f32.mxu0 0.0
            %2164 = vmatmul.mubr.f32.gmra.mxu0 %v757
            %v2165 = vpop.f32.mrf.mxu0
            %v2166 = vadd.f32 0.0, %v2165
            %v2167 = vpop.f32.mrf.mxu0
            %2168 = vmatprep.mubr.f32.mxu0 0.0
            %2169 = vmatmul.mubr.f32.gmra.mxu0 %v760
            %v2170 = vpop.f32.mrf.mxu0
            %v2171 = vadd.f32 0.0, %v2170
            %v2172 = vpop.f32.mrf.mxu0
            %2173 = vmatprep.mubr.f32.mxu0 0.0
            %2174 = vmatmul.mubr.f32.gmra.mxu0 %v763
            %v2175 = vpop.f32.mrf.mxu0
            %v2176 = vadd.f32 0.0, %v2175
            %v2177 = vpop.f32.mrf.mxu0
            %2178 = vmatprep.mubr.f32.mxu0 0.0
            %2179 = vmatmul.mubr.f32.gmra.mxu0 %v766
            %v2180 = vpop.f32.mrf.mxu0
            %v2181 = vadd.f32 0.0, %v2180
            %v2182 = vpop.f32.mrf.mxu0
            %2183 = vmatprep.mubr.f32.mxu0 0.0
            %2184 = vmatmul.mubr.f32.gmra.mxu0 %v769
            %v2185 = vpop.f32.mrf.mxu0
            %v2186 = vadd.f32 0.0, %v2185
            %v2187 = vpop.f32.mrf.mxu0
            %2188 = vmatprep.mubr.f32.mxu0 0.0
            %2189 = vmatmul.mubr.f32.gmra.mxu0 %v772
            %v2190 = vpop.f32.mrf.mxu0
            %v2191 = vadd.f32 0.0, %v2190
            %v2192 = vpop.f32.mrf.mxu0
            %2193 = vmatprep.mubr.f32.mxu0 0.0
            %2194 = vmatmul.mubr.f32.gmra.mxu0 %v775
            %v2195 = vpop.f32.mrf.mxu0
            %v2196 = vadd.f32 0.0, %v2195
            %v2197 = vpop.f32.mrf.mxu0
            %2198 = vmatprep.mubr.f32.mxu0 0.0
            %2199 = vmatmul.mubr.f32.gmra.mxu0 %v778
            %v2200 = vpop.f32.mrf.mxu0
            %v2201 = vadd.f32 0.0, %v2200
            %v2202 = vpop.f32.mrf.mxu0
            %2203 = vmatprep.mubr.f32.mxu0 0.0
            %2204 = vmatmul.mubr.f32.gmra.mxu0 %v781
            %v2205 = vpop.f32.mrf.mxu0
            %v2206 = vadd.f32 0.0, %v2205
            %v2207 = vpop.f32.mrf.mxu0
            %2208 = vmatprep.mubr.f32.mxu0 0.0
            %2209 = vmatmul.mubr.f32.gmra.mxu0 %v784
            %v2210 = vpop.f32.mrf.mxu0
            %v2211 = vadd.f32 0.0, %v2210
            %v2212 = vpop.f32.mrf.mxu0
            %2213 = vmatprep.mubr.f32.mxu0 0.0
            %2214 = vmatmul.mubr.f32.gmra.mxu0 %v787
            %v2215 = vpop.f32.mrf.mxu0
            %v2216 = vadd.f32 0.0, %v2215
            %v2217 = vpop.f32.mrf.mxu0
            %2218 = vmatprep.mubr.f32.mxu0 0.0
            %2219 = vmatmul.mubr.f32.gmra.mxu0 %v790
            %v2220 = vpop.f32.mrf.mxu0
            %v2221 = vadd.f32 0.0, %v2220
            %v2222 = vpop.f32.mrf.mxu0
            %2223 = vmatprep.mubr.f32.mxu0 0.0
            %2224 = vmatmul.mubr.f32.gmra.mxu0 %v793
            %v2225 = vpop.f32.mrf.mxu0
            %v2226 = vadd.f32 0.0, %v2225
            %v2227 = vpop.f32.mrf.mxu0
            %2228 = vmatprep.mubr.f32.mxu0 0.0
            %2229 = vmatmul.mubr.f32.gmra.mxu0 %v796
            %v2230 = vpop.f32.mrf.mxu0
            %v2231 = vadd.f32 0.0, %v2230
            %v2232 = vpop.f32.mrf.mxu0
            %2233 = vdwg.mxu0
            %v2234 = vsub.f32 %v2156, %v994
            %v2235 = vsub.f32 %v2161, %v999
            %v2236 = vsub.f32 %v2166, %v1004
            %v2237 = vsub.f32 %v2171, %v1009
            %v2238 = vsub.f32 %v2176, %v1014
            %v2239 = vsub.f32 %v2181, %v1019
            %v2240 = vsub.f32 %v2186, %v1024
            %v2241 = vsub.f32 %v2191, %v1029
            %v2242 = vsub.f32 %v2196, %v1034
            %v2243 = vsub.f32 %v2201, %v1039
            %v2244 = vsub.f32 %v2206, %v1044
            %v2245 = vsub.f32 %v2211, %v1049
            %v2246 = vsub.f32 %v2216, %v1054
            %v2247 = vsub.f32 %v2221, %v1059
            %v2248 = vsub.f32 %v2226, %v1064
            %v2249 = vsub.f32 %v2231, %v1069
            %v2251 = vlaneseq
            %v2252 = vshrl.u32 %v2251, 7
            %v2253 = vsub.s32 0, %v2252
            %v2254 = vrot.slane %v747, %v2253
            %v2256 = vsub.f32 %v2234, %v2254
            %v2257 = vsub.f32 %v2235, %v2254
            %v2258 = vsub.f32 %v2236, %v2254
            %v2259 = vsub.f32 %v2237, %v2254
            %v2260 = vsub.f32 %v2238, %v2254
            %v2261 = vsub.f32 %v2239, %v2254
            %v2262 = vsub.f32 %v2240, %v2254
            %v2263 = vsub.f32 %v2241, %v2254
            %v2264 = vsub.f32 %v2242, %v2254
            %v2265 = vsub.f32 %v2243, %v2254
            %v2266 = vsub.f32 %v2244, %v2254
            %v2267 = vsub.f32 %v2245, %v2254
            %v2268 = vsub.f32 %v2246, %v2254
            %v2269 = vsub.f32 %v2247, %v2254
            %v2270 = vsub.f32 %v2248, %v2254
            %v2271 = vsub.f32 %v2249, %v2254
            %v2272 = vmul.f32 %v2256, 1.442695
            %v2273 = vpow.pop %v2272
            %v2274 = vmul.f32 %v2257, 1.442695
            %v2275 = vpow.pop %v2274
            %v2276 = vmul.f32 %v2258, 1.442695
            %v2277 = vpow.pop %v2276
            %v2278 = vmul.f32 %v2259, 1.442695
            %v2279 = vpow.pop %v2278
            %v2280 = vmul.f32 %v2260, 1.442695
            %v2281 = vpow.pop %v2280
            %v2282 = vmul.f32 %v2261, 1.442695
            %v2283 = vpow.pop %v2282
            %v2284 = vmul.f32 %v2262, 1.442695
            %v2285 = vpow.pop %v2284
            %v2286 = vmul.f32 %v2263, 1.442695
            %v2287 = vpow.pop %v2286
            %v2288 = vmul.f32 %v2264, 1.442695
            %v2289 = vpow.pop %v2288
            %v2290 = vmul.f32 %v2265, 1.442695
            %v2291 = vpow.pop %v2290
            %v2292 = vmul.f32 %v2266, 1.442695
            %v2293 = vpow.pop %v2292
            %v2294 = vmul.f32 %v2267, 1.442695
            %v2295 = vpow.pop %v2294
            %v2296 = vmul.f32 %v2268, 1.442695
            %v2297 = vpow.pop %v2296
            %v2298 = vmul.f32 %v2269, 1.442695
            %v2299 = vpow.pop %v2298
            %v2300 = vmul.f32 %v2270, 1.442695
            %v2301 = vpow.pop %v2300
            %v2302 = vmul.f32 %v2271, 1.442695
            %v2303 = vpow.pop %v2302
            %2304 = vmatprep.subr.mxu0 0.0
            %2305 = vmatpush1.xpose.msra.mxu0 %v844
            %2306 = vmatprep.subr.mxu0 0.0
            %2307 = vmatpush1.xpose.msra.mxu0 %v841
            %2308 = vmatprep.subr.mxu0 0.0
            %2309 = vmatpush1.xpose.msra.mxu0 %v838
            %2310 = vmatprep.subr.mxu0 0.0
            %2311 = vmatpush1.xpose.msra.mxu0 %v835
            %2312 = vmatprep.subr.mxu0 0.0
            %2313 = vmatpush1.xpose.msra.mxu0 %v832
            %2314 = vmatprep.subr.mxu0 0.0
            %2315 = vmatpush1.xpose.msra.mxu0 %v829
            %2316 = vmatprep.subr.mxu0 0.0
            %2317 = vmatpush1.xpose.msra.mxu0 %v826
            %2318 = vmatprep.subr.mxu0 0.0
            %2319 = vmatpush1.xpose.msra.mxu0 %v823
            %2320 = vmatprep.subr.mxu0 0.0
            %2321 = vmatpush1.xpose.msra.mxu0 %v820
            %2322 = vmatprep.subr.mxu0 0.0
            %2323 = vmatpush1.xpose.msra.mxu0 %v817
            %2324 = vmatprep.subr.mxu0 0.0
            %2325 = vmatpush1.xpose.msra.mxu0 %v814
            %2326 = vmatprep.subr.mxu0 0.0
            %2327 = vmatpush1.xpose.msra.mxu0 %v811
            %2328 = vmatprep.subr.mxu0 0.0
            %2329 = vmatpush1.xpose.msra.mxu0 %v808
            %2330 = vmatprep.subr.mxu0 0.0
            %2331 = vmatpush1.xpose.msra.mxu0 %v805
            %2332 = vmatprep.subr.mxu0 0.0
            %2333 = vmatpush1.xpose.msra.mxu0 %v802
            %2334 = vmatprep.subr.mxu0 0.0
            %2335 = vmatpush1.xpose.msra.mxu0 %v799
            %2336 = vmatprep.subr.mxu0 0.0
            %2337 = vmatpush2.xpose.msra.mxu0 0.0
            %2338 = vmatprep.subr.mxu0 0.0
            %2339 = vmatpush2.xpose.msra.mxu0 0.0
            %2340 = vmatprep.subr.mxu0 0.0
            %2341 = vmatpush2.xpose.msra.mxu0 0.0
            %2342 = vmatprep.subr.mxu0 0.0
            %2343 = vmatpush2.xpose.msra.mxu0 0.0
            %2344 = vmatprep.subr.mxu0 0.0
            %2345 = vmatpush2.xpose.msra.mxu0 0.0
            %2346 = vmatprep.subr.mxu0 0.0
            %2347 = vmatpush2.xpose.msra.mxu0 0.0
            %2348 = vmatprep.subr.mxu0 0.0
            %2349 = vmatpush2.xpose.msra.mxu0 0.0
            %2350 = vmatprep.subr.mxu0 0.0
            %2351 = vmatpush2.xpose.msra.mxu0 0.0
            %2352 = vmatprep.subr.mxu0 0.0
            %2353 = vmatpush2.xpose.msra.mxu0 0.0
            %2354 = vmatprep.subr.mxu0 0.0
            %2355 = vmatpush2.xpose.msra.mxu0 0.0
            %2356 = vmatprep.subr.mxu0 0.0
            %2357 = vmatpush2.xpose.msra.mxu0 0.0
            %2358 = vmatprep.subr.mxu0 0.0
            %2359 = vmatpush2.xpose.msra.mxu0 0.0
            %2360 = vmatprep.subr.mxu0 0.0
            %2361 = vmatpush2.xpose.msra.mxu0 0.0
            %2362 = vmatprep.subr.mxu0 0.0
            %2363 = vmatpush2.xpose.msra.mxu0 0.0
            %2364 = vmatprep.subr.mxu0 0.0
            %2365 = vmatpush2.xpose.msra.mxu0 0.0
            %2366 = vmatprep.subr.mxu0 0.0
            %2367 = vmatpush2.xpose.msra.mxu0 0.0
            %2368 = vmatprep.mubr.f32.mxu0 0.0
            %2369 = vmatmul.mubr.f32.gmra.mxu0 %v799
            %v2370 = vpop.f32.mrf.mxu0
            %v2371 = vadd.f32 0.0, %v2370
            %v2372 = vpop.f32.mrf.mxu0
            %2373 = vmatprep.mubr.f32.mxu0 0.0
            %2374 = vmatmul.mubr.f32.gmra.mxu0 %v802
            %v2375 = vpop.f32.mrf.mxu0
            %v2376 = vadd.f32 0.0, %v2375
            %v2377 = vpop.f32.mrf.mxu0
            %2378 = vmatprep.mubr.f32.mxu0 0.0
            %2379 = vmatmul.mubr.f32.gmra.mxu0 %v805
            %v2380 = vpop.f32.mrf.mxu0
            %v2381 = vadd.f32 0.0, %v2380
            %v2382 = vpop.f32.mrf.mxu0
            %2383 = vmatprep.mubr.f32.mxu0 0.0
            %2384 = vmatmul.mubr.f32.gmra.mxu0 %v808
            %v2385 = vpop.f32.mrf.mxu0
            %v2386 = vadd.f32 0.0, %v2385
            %v2387 = vpop.f32.mrf.mxu0
            %2388 = vmatprep.mubr.f32.mxu0 0.0
            %2389 = vmatmul.mubr.f32.gmra.mxu0 %v811
            %v2390 = vpop.f32.mrf.mxu0
            %v2391 = vadd.f32 0.0, %v2390
            %v2392 = vpop.f32.mrf.mxu0
            %2393 = vmatprep.mubr.f32.mxu0 0.0
            %2394 = vmatmul.mubr.f32.gmra.mxu0 %v814
            %v2395 = vpop.f32.mrf.mxu0
            %v2396 = vadd.f32 0.0, %v2395
            %v2397 = vpop.f32.mrf.mxu0
            %2398 = vmatprep.mubr.f32.mxu0 0.0
            %2399 = vmatmul.mubr.f32.gmra.mxu0 %v817
            %v2400 = vpop.f32.mrf.mxu0
            %v2401 = vadd.f32 0.0, %v2400
            %v2402 = vpop.f32.mrf.mxu0
            %2403 = vmatprep.mubr.f32.mxu0 0.0
            %2404 = vmatmul.mubr.f32.gmra.mxu0 %v820
            %v2405 = vpop.f32.mrf.mxu0
            %v2406 = vadd.f32 0.0, %v2405
            %v2407 = vpop.f32.mrf.mxu0
            %2408 = vmatprep.mubr.f32.mxu0 0.0
            %2409 = vmatmul.mubr.f32.gmra.mxu0 %v823
            %v2410 = vpop.f32.mrf.mxu0
            %v2411 = vadd.f32 0.0, %v2410
            %v2412 = vpop.f32.mrf.mxu0
            %2413 = vmatprep.mubr.f32.mxu0 0.0
            %2414 = vmatmul.mubr.f32.gmra.mxu0 %v826
            %v2415 = vpop.f32.mrf.mxu0
            %v2416 = vadd.f32 0.0, %v2415
            %v2417 = vpop.f32.mrf.mxu0
            %2418 = vmatprep.mubr.f32.mxu0 0.0
            %2419 = vmatmul.mubr.f32.gmra.mxu0 %v829
            %v2420 = vpop.f32.mrf.mxu0
            %v2421 = vadd.f32 0.0, %v2420
            %v2422 = vpop.f32.mrf.mxu0
            %2423 = vmatprep.mubr.f32.mxu0 0.0
            %2424 = vmatmul.mubr.f32.gmra.mxu0 %v832
            %v2425 = vpop.f32.mrf.mxu0
            %v2426 = vadd.f32 0.0, %v2425
            %v2427 = vpop.f32.mrf.mxu0
            %2428 = vmatprep.mubr.f32.mxu0 0.0
            %2429 = vmatmul.mubr.f32.gmra.mxu0 %v835
            %v2430 = vpop.f32.mrf.mxu0
            %v2431 = vadd.f32 0.0, %v2430
            %v2432 = vpop.f32.mrf.mxu0
            %2433 = vmatprep.mubr.f32.mxu0 0.0
            %2434 = vmatmul.mubr.f32.gmra.mxu0 %v838
            %v2435 = vpop.f32.mrf.mxu0
            %v2436 = vadd.f32 0.0, %v2435
            %v2437 = vpop.f32.mrf.mxu0
            %2438 = vmatprep.mubr.f32.mxu0 0.0
            %2439 = vmatmul.mubr.f32.gmra.mxu0 %v841
            %v2440 = vpop.f32.mrf.mxu0
            %v2441 = vadd.f32 0.0, %v2440
            %v2442 = vpop.f32.mrf.mxu0
            %2443 = vmatprep.mubr.f32.mxu0 0.0
            %2444 = vmatmul.mubr.f32.gmra.mxu0 %v844
            %v2445 = vpop.f32.mrf.mxu0
            %v2446 = vadd.f32 0.0, %v2445
            %v2447 = vpop.f32.mrf.mxu0
            %2448 = vdwg.mxu0
            %2450 = vset.pattern.permute.xlu0 0
            %2451 = vperm.xlu0 %2450, %v731
            %v2452 = vpop.permute.xlu0 %2451
            %2455 = vset.pattern.permute.xlu0 0
            %2456 = vperm.xlu0 %2455, %v732
            %v2457 = vpop.permute.xlu0 %2456
            %2460 = vset.pattern.permute.xlu0 0
            %2461 = vperm.xlu0 %2460, %v733
            %v2462 = vpop.permute.xlu0 %2461
            %2465 = vset.pattern.permute.xlu0 0
            %2466 = vperm.xlu0 %2465, %v734
            %v2467 = vpop.permute.xlu0 %2466
            %2470 = vset.pattern.permute.xlu0 0
            %2471 = vperm.xlu0 %2470, %v735
            %v2472 = vpop.permute.xlu0 %2471
            %2475 = vset.pattern.permute.xlu0 0
            %2476 = vperm.xlu0 %2475, %v736
            %v2477 = vpop.permute.xlu0 %2476
            %2480 = vset.pattern.permute.xlu0 0
            %2481 = vperm.xlu0 %2480, %v737
            %v2482 = vpop.permute.xlu0 %2481
            %2485 = vset.pattern.permute.xlu0 0
            %2486 = vperm.xlu0 %2485, %v738
            %v2487 = vpop.permute.xlu0 %2486
            %2490 = vset.pattern.permute.xlu0 0
            %2491 = vperm.xlu0 %2490, %v739
            %v2492 = vpop.permute.xlu0 %2491
            %2495 = vset.pattern.permute.xlu0 0
            %2496 = vperm.xlu0 %2495, %v740
            %v2497 = vpop.permute.xlu0 %2496
            %2500 = vset.pattern.permute.xlu0 0
            %2501 = vperm.xlu0 %2500, %v741
            %v2502 = vpop.permute.xlu0 %2501
            %2505 = vset.pattern.permute.xlu0 0
            %2506 = vperm.xlu0 %2505, %v742
            %v2507 = vpop.permute.xlu0 %2506
            %2510 = vset.pattern.permute.xlu0 0
            %2511 = vperm.xlu0 %2510, %v743
            %v2512 = vpop.permute.xlu0 %2511
            %2515 = vset.pattern.permute.xlu0 0
            %2516 = vperm.xlu0 %2515, %v744
            %v2517 = vpop.permute.xlu0 %2516
            %2520 = vset.pattern.permute.xlu0 0
            %2521 = vperm.xlu0 %2520, %v745
            %v2522 = vpop.permute.xlu0 %2521
            %2525 = vset.pattern.permute.xlu0 0
            %2526 = vperm.xlu0 %2525, %v746
            %v2527 = vpop.permute.xlu0 %2526
            %v2529 = vsub.f32 %v2371, %v2452
            %v2530 = vsub.f32 %v2376, %v2457
            %v2531 = vsub.f32 %v2381, %v2462
            %v2532 = vsub.f32 %v2386, %v2467
            %v2533 = vsub.f32 %v2391, %v2472
            %v2534 = vsub.f32 %v2396, %v2477
            %v2535 = vsub.f32 %v2401, %v2482
            %v2536 = vsub.f32 %v2406, %v2487
            %v2537 = vsub.f32 %v2411, %v2492
            %v2538 = vsub.f32 %v2416, %v2497
            %v2539 = vsub.f32 %v2421, %v2502
            %v2540 = vsub.f32 %v2426, %v2507
            %v2541 = vsub.f32 %v2431, %v2512
            %v2542 = vsub.f32 %v2436, %v2517
            %v2543 = vsub.f32 %v2441, %v2522
            %v2544 = vsub.f32 %v2446, %v2527
            %v2545 = vsub.f32 %v2529, %v1091
            %v2546 = vsub.f32 %v2530, %v1091
            %v2547 = vsub.f32 %v2531, %v1091
            %v2548 = vsub.f32 %v2532, %v1091
            %v2549 = vsub.f32 %v2533, %v1091
            %v2550 = vsub.f32 %v2534, %v1091
            %v2551 = vsub.f32 %v2535, %v1091
            %v2552 = vsub.f32 %v2536, %v1091
            %v2553 = vsub.f32 %v2537, %v1091
            %v2554 = vsub.f32 %v2538, %v1091
            %v2555 = vsub.f32 %v2539, %v1091
            %v2556 = vsub.f32 %v2540, %v1091
            %v2557 = vsub.f32 %v2541, %v1091
            %v2558 = vsub.f32 %v2542, %v1091
            %v2559 = vsub.f32 %v2543, %v1091
            %v2560 = vsub.f32 %v2544, %v1091
            %v2561 = vmul.f32 %v2545, 1.442695
            %v2562 = vpow.pop %v2561
            %v2563 = vmul.f32 %v2546, 1.442695
            %v2564 = vpow.pop %v2563
            %v2565 = vmul.f32 %v2547, 1.442695
            %v2566 = vpow.pop %v2565
            %v2567 = vmul.f32 %v2548, 1.442695
            %v2568 = vpow.pop %v2567
            %v2569 = vmul.f32 %v2549, 1.442695
            %v2570 = vpow.pop %v2569
            %v2571 = vmul.f32 %v2550, 1.442695
            %v2572 = vpow.pop %v2571
            %v2573 = vmul.f32 %v2551, 1.442695
            %v2574 = vpow.pop %v2573
            %v2575 = vmul.f32 %v2552, 1.442695
            %v2576 = vpow.pop %v2575
            %v2577 = vmul.f32 %v2553, 1.442695
            %v2578 = vpow.pop %v2577
            %v2579 = vmul.f32 %v2554, 1.442695
            %v2580 = vpow.pop %v2579
            %v2581 = vmul.f32 %v2555, 1.442695
            %v2582 = vpow.pop %v2581
            %v2583 = vmul.f32 %v2556, 1.442695
            %v2584 = vpow.pop %v2583
            %v2585 = vmul.f32 %v2557, 1.442695
            %v2586 = vpow.pop %v2585
            %v2587 = vmul.f32 %v2558, 1.442695
            %v2588 = vpow.pop %v2587
            %v2589 = vmul.f32 %v2559, 1.442695
            %v2590 = vpow.pop %v2589
            %v2591 = vmul.f32 %v2560, 1.442695
            %v2592 = vpow.pop %v2591
            %v2593 = vadd.f32 %v2273, %v2562
            %v2594 = vadd.f32 %v2275, %v2564
            %v2595 = vadd.f32 %v2277, %v2566
            %v2596 = vadd.f32 %v2279, %v2568
            %v2597 = vadd.f32 %v2281, %v2570
            %v2598 = vadd.f32 %v2283, %v2572
            %v2599 = vadd.f32 %v2285, %v2574
            %v2600 = vadd.f32 %v2287, %v2576
            %v2601 = vadd.f32 %v2289, %v2578
            %v2602 = vadd.f32 %v2291, %v2580
            %v2603 = vadd.f32 %v2293, %v2582
            %v2604 = vadd.f32 %v2295, %v2584
            %v2605 = vadd.f32 %v2297, %v2586
            %v2606 = vadd.f32 %v2299, %v2588
            %v2607 = vadd.f32 %v2301, %v2590
            %v2608 = vadd.f32 %v2303, %v2592
            %v2609 = vmul.f32 %v1110, 2.0
            %v2610 = vmul.f32 %v1112, 2.0
            %v2611 = vmul.f32 %v1114, 2.0
            %v2612 = vmul.f32 %v1116, 2.0
            %v2613 = vmul.f32 %v1118, 2.0
            %v2614 = vmul.f32 %v1120, 2.0
            %v2615 = vmul.f32 %v1122, 2.0
            %v2616 = vmul.f32 %v1124, 2.0
            %v2617 = vmul.f32 %v1126, 2.0
            %v2618 = vmul.f32 %v1128, 2.0
            %v2619 = vmul.f32 %v1130, 2.0
            %v2620 = vmul.f32 %v1132, 2.0
            %v2621 = vmul.f32 %v1134, 2.0
            %v2622 = vmul.f32 %v1136, 2.0
            %v2623 = vmul.f32 %v1138, 2.0
            %v2624 = vmul.f32 %v1140, 2.0
            %v2625 = vsub.f32 %v2593, %v2609
            %v2626 = vsub.f32 %v2594, %v2610
            %v2627 = vsub.f32 %v2595, %v2611
            %v2628 = vsub.f32 %v2596, %v2612
            %v2629 = vsub.f32 %v2597, %v2613
            %v2630 = vsub.f32 %v2598, %v2614
            %v2631 = vsub.f32 %v2599, %v2615
            %v2632 = vsub.f32 %v2600, %v2616
            %v2633 = vsub.f32 %v2601, %v2617
            %v2634 = vsub.f32 %v2602, %v2618
            %v2635 = vsub.f32 %v2603, %v2619
            %v2636 = vsub.f32 %v2604, %v2620
            %v2637 = vsub.f32 %v2605, %v2621
            %v2638 = vsub.f32 %v2606, %v2622
            %v2639 = vsub.f32 %v2607, %v2623
            %v2640 = vsub.f32 %v2608, %v2624
            %v2641 = vlaneseq
            %v2642 = vshrl.u32 %v2641, 7
            %v2643 = vadd.s32 %v2642, 8
            %v2644 = vadd.s32 %v2642, 16
            %v2645 = vadd.s32 %v2642, 24
            %v2646 = vadd.s32 %v2642, 32
            %v2647 = vadd.s32 %v2642, 40
            %v2648 = vadd.s32 %v2642, 48
            %v2649 = vadd.s32 %v2642, 56
            %v2650 = vadd.s32 %v2642, 64
            %v2651 = vadd.s32 %v2642, 72
            %v2652 = vadd.s32 %v2642, 80
            %v2653 = vadd.s32 %v2642, 88
            %v2654 = vadd.s32 %v2642, 96
            %v2655 = vadd.s32 %v2642, 104
            %v2656 = vadd.s32 %v2642, 112
            %v2657 = vadd.s32 %v2642, 120
            %v2658 = vlaneseq
            %v2659 = vand.u32 %v2658, 127
            %vm2660 = vcmp.eq.s32.totalorder %v2642, %v2659
            %vm2661 = vcmp.eq.s32.totalorder %v2643, %v2659
            %vm2662 = vcmp.eq.s32.totalorder %v2644, %v2659
            %vm2663 = vcmp.eq.s32.totalorder %v2645, %v2659
            %vm2664 = vcmp.eq.s32.totalorder %v2646, %v2659
            %vm2665 = vcmp.eq.s32.totalorder %v2647, %v2659
            %vm2666 = vcmp.eq.s32.totalorder %v2648, %v2659
            %vm2667 = vcmp.eq.s32.totalorder %v2649, %v2659
            %vm2668 = vcmp.eq.s32.totalorder %v2650, %v2659
            %vm2669 = vcmp.eq.s32.totalorder %v2651, %v2659
            %vm2670 = vcmp.eq.s32.totalorder %v2652, %v2659
            %vm2671 = vcmp.eq.s32.totalorder %v2653, %v2659
            %vm2672 = vcmp.eq.s32.totalorder %v2654, %v2659
            %vm2673 = vcmp.eq.s32.totalorder %v2655, %v2659
            %vm2674 = vcmp.eq.s32.totalorder %v2656, %v2659
            %vm2675 = vcmp.eq.s32.totalorder %v2657, %v2659
            %v2676 = vsel %vm2660, 0.0, %v2625
            %v2677 = vsel %vm2661, 0.0, %v2626
            %v2678 = vsel %vm2662, 0.0, %v2627
            %v2679 = vsel %vm2663, 0.0, %v2628
            %v2680 = vsel %vm2664, 0.0, %v2629
            %v2681 = vsel %vm2665, 0.0, %v2630
            %v2682 = vsel %vm2666, 0.0, %v2631
            %v2683 = vsel %vm2667, 0.0, %v2632
            %v2684 = vsel %vm2668, 0.0, %v2633
            %v2685 = vsel %vm2669, 0.0, %v2634
            %v2686 = vsel %vm2670, 0.0, %v2635
            %v2687 = vsel %vm2671, 0.0, %v2636
            %v2688 = vsel %vm2672, 0.0, %v2637
            %v2689 = vsel %vm2673, 0.0, %v2638
            %v2690 = vsel %vm2674, 0.0, %v2639
            %v2691 = vsel %vm2675, 0.0, %v2640
            %v2692 = vadd.f32 %v2676, %v2677
            %v2693 = vadd.f32 %v2692, %v2678
            %v2694 = vadd.f32 %v2693, %v2679
            %v2695 = vadd.f32 %v2694, %v2680
            %v2696 = vadd.f32 %v2695, %v2681
            %v2697 = vadd.f32 %v2696, %v2682
            %v2698 = vadd.f32 %v2697, %v2683
            %v2699 = vadd.f32 %v2698, %v2684
            %v2700 = vadd.f32 %v2699, %v2685
            %v2701 = vadd.f32 %v2700, %v2686
            %v2702 = vadd.f32 %v2701, %v2687
            %v2703 = vadd.f32 %v2702, %v2688
            %v2704 = vadd.f32 %v2703, %v2689
            %v2705 = vadd.f32 %v2704, %v2690
            %v2706 = vadd.f32 %v2705, %v2691
            %v2707 = vld [vmem:[%s548] sm:$0xff]
            %v2708 = vadd.f32 %v2707, %v2706
            %2709 = vst [vmem:[%s548] sm:$0xff] %v2708
          $region68: #{tpu_custom_call.1} parent=59 // pred_fallthru
            _
        $region60: #{tpu_custom_call.1} parent=51 // pred_fallthru
          _
        %s2710 = sand.u32 %s315, 1
        %s2711 = scalar_lea.sflag [#allocation7], %s2710
        %s2712 = sand.u32 %s315, 1
        %s2713 = smul.addr %s2712, 8
        %s2714 = scalar_lea.vmem [#allocation6], %s2713
        // Predicated region
        $region69: #{tpu_custom_call.1} parent=51 // pred_check
          %p2715 = pneg %p325
        $region70: #{tpu_custom_call.1} parent=51 // pred_check_branch
          %2717 = sbr.rel (%p2715) target = $region72
        $region71: #{tpu_custom_call.1} parent=51 // pred_region
          %s2719 = ssub.s32 128, 128
          %2720 = vsyncadd %s2711, %s2719
          %s2721 = smul.addr %s43, 128
          %s2722 = scalar_lea.hbm %s11, %s2721
          %s2724 = sshll.u32 %s2714, 4
          %s2725 = int_to_ptr.vmem [resolvable:$true] %s2724
          %2727 = dma.vmem_to_hbm [thread:$0]  %s2725, 128, %s2722, %s2711
        $region72: #{tpu_custom_call.1} parent=51 // pred_fallthru
          _
      $region52: #{tpu_custom_call.1} parent=5 // pred_fallthru
        _
      %p2728 = scmp.le.s32.totalorder 2, %s34
      // Predicated region
      $region73: #{tpu_custom_call.1} parent=5 // pred_check
        %p2729 = pneg %p2728
      $region74: #{tpu_custom_call.1} parent=5 // pred_check_branch
        %2731 = sbr.rel (%p2729) target = $region76
      $region75: #{tpu_custom_call.1} parent=5 // pred_region
        %s2732 = ssub.s32 %s34, 2
        // Predicated region
        $region77: #{tpu_custom_call.1} parent=75 // pred_check
          %p2733 = pneg %p331
        $region78: #{tpu_custom_call.1} parent=75 // pred_check_branch
          %2735 = sbr.rel (%p2733) target = $region80
        $region79: #{tpu_custom_call.1} parent=75 // pred_region
          %s2736 = sand.u32 %s316, 1
          %s2737 = scalar_lea.sflag [#allocation7], %s2736
          %s2738 = sand.u32 %s316, 1
          %s2739 = smul.addr %s2738, 8
          %s2740 = scalar_lea.vmem [#allocation6], %s2739
          %2741 = dma.done %s2737, 128
        $region80: #{tpu_custom_call.1} parent=75 // pred_fallthru
          _
      $region76: #{tpu_custom_call.1} parent=5 // pred_fallthru
        _
    $region6: #{tpu_custom_call.1} parent=1 // loop_footer
      %s38 = sadd.s32 1, %s34
    $region7: #{tpu_custom_call.1} parent=1 // loop_footer_branch
      %33 = sbr.rel target = $region3
    $region8: #{tpu_custom_call.1} parent=1 // loop_exit
      _
    %2742 = vsyncpa [#allocation7], 1
    %s2743 = scalar_lea.sflag [#allocation7], 1
    %2744 = vsyncpa %s2743, 1

</llo_original>
